<compile_context>
chip_gen: v7x
topology: tpu7x:2x2x1
jax: 0.10.0
libtpu: 0.0.40
codegen_flags: <defaults>
</compile_context>

<pallas_src>
import functools

import jax
import jax.numpy as jnp
from jax import lax
from jax.experimental import pallas as pl
from jax.experimental.pallas import tpu as pltpu

_LANE = 128
_MIB = 1024 * 1024


def _round_up(x, m):
    return ((x + m - 1) // m) * m


def _vmem_capacity_bytes():
    """Physical per-core VMEM; conservative fallback if the query fails."""
    try:
        return int(pltpu.get_tpu_info().vmem_capacity_bytes)
    except Exception:
        return 64 * _MIB  # v7x per-TC size; safe lower bound for budgeting


def _row_tile():
    """256 fills the 256-wide MXU on v6e/v7x; 128 is native on v5e and older."""
    try:
        kind = jax.devices()[0].device_kind.lower()
    except Exception:
        return 128
    if "v6" in kind or "v7" in kind:
        return 256
    return 128


def _const_spec(block_shape, index_map, single_buffer):
    """BlockSpec for blocks whose index never changes across the grid.

    With single_buffer=True request pl.Buffered(1) so Pallas does not allocate
    a second pipeline buffer for the resident A / features / W0 / output."""
    if single_buffer:
        return pl.BlockSpec(block_shape, index_map, pipeline_mode=pl.Buffered(1))
    return pl.BlockSpec(block_shape, index_map)


# ----------------------------------------------------------------------------
# Fused multi-layer GNN kernel.
# ----------------------------------------------------------------------------
def _make_fused_kernel(nlayer: int, nclass: int, c_pad: int, tm: int,
                       a_resident: bool):
    def kernel(a_ref, feat_ref, w0_ref, wl_ref, b_ref, o_ref, h_ref, hw_ref):
        l = pl.program_id(0)               # layer index (outer, sequential)
        i = pl.program_id(1)               # row tile within the layer
        row0 = pl.multiple_of(i * tm, tm)

        # --- Once per layer (i == 0): HW = H_l @ W_l.  The N^2-scaled
        #     aggregation below then carries only the small output width.
        @pl.when(jnp.logical_and(i == 0, l == 0))
        def _():
            # Layer-0 input = (eval-mode dropout of) raw features, read in
            # place from the resident features block (no scratch copy).
            hw_ref[...] = jnp.dot(
                feat_ref[...], w0_ref[...],
                preferred_element_type=jnp.float32).astype(hw_ref.dtype)

        @pl.when(jnp.logical_and(i == 0, l > 0))
        def _():
            in_slab = (l + 1) % 2          # == (l - 1) % 2: previous layer's output
            hw_ref[...] = jnp.dot(
                h_ref[in_slab], wl_ref[0],
                preferred_element_type=jnp.float32).astype(hw_ref.dtype)

        # --- Per row tile: out = A[rows] @ HW + b  (bf16 MXU, f32 accumulate).
        if a_resident:
            a_rows = a_ref[pl.ds(row0, tm), :]      # resident (n_pad, n_pad) A
        else:
            a_rows = a_ref[...]                     # streamed (tm, n_pad) block
        out = jnp.dot(a_rows, hw_ref[...],
                      preferred_element_type=jnp.float32) + b_ref[0]

        @pl.when(l < nlayer - 1)
        def _():
            # ReLU fused into the single ping-pong write-back.
            h_ref[l % 2, pl.ds(row0, tm), :] = (
                jnp.maximum(out, 0.0).astype(h_ref.dtype))

        @pl.when(l == nlayer - 1)
        def _():
            # Row-wise log_softmax over the first nclass lanes of the
            # lane-dense c_pad-wide output slab.
            z = out[:, :c_pad]
            cols = lax.broadcasted_iota(jnp.int32, z.shape, 1)
            valid = cols < nclass
            zm = jnp.where(valid, z, -jnp.inf)
            m = jnp.max(zm, axis=-1, keepdims=True)
            p = jnp.exp(zm - m)                     # padded lanes -> exp(-inf)=0
            lse = jnp.log(jnp.sum(p, axis=-1, keepdims=True))
            o_ref[pl.ds(row0, tm), :] = jnp.where(valid, z - m - lse, 0.0)

    return kernel


def gnn_fused_forward(a_hat, features, weights, biases, nclass,
                      single_buffer_constants=True):
    """Run the whole MPNN stack in one pallas_call. Returns [N, nclass] f32."""
    nlayer = len(weights)
    n = features.shape[0]
    dims = [weights[0].shape[0]] + [w.shape[1] for w in weights]

    tm = _row_tile()
    n_pad = _round_up(n, tm)
    f0_pad = _round_up(dims[0], _LANE)                     # feature width
    c_pad = _round_up(nclass, _LANE)                       # output width
    f_work = max(_round_up(d, _LANE) for d in dims[1:])    # hidden / class width

    # ---------------- VMEM budgeting (generation-aware) ----------------
    budget = _vmem_capacity_bytes()
    cap = int(budget * 0.85)                    # leave compiler headroom
    buf_mult = 1 if single_buffer_constants else 2
    a_bytes = n_pad * n_pad * 2
    const_in_bytes = (n_pad * f0_pad * 2        # features (bf16)
                      + f0_pad * f_work * 2     # W0 (bf16)
                      + n_pad * c_pad * 4)      # output slab (f32)
    scratch_bytes = 2 * n_pad * f_work * 2 + n_pad * f_work * 2  # H ping-pong + HW
    a_resident = (a_bytes * buf_mult + const_in_bytes * buf_mult
                  + scratch_bytes) <= int(0.7 * budget)
    per_layer_bytes = 2 * (f_work * f_work * 2 + f_work * 4)     # W_l + bias (dbl buf)
    needed = (const_in_bytes * buf_mult + scratch_bytes + per_layer_bytes
              + (a_bytes * buf_mult if a_resident else 2 * tm * n_pad * 2))
    vmem_limit = int(min(cap, max(32 * _MIB, needed + needed // 2 + 8 * _MIB)))

    # ---------------- Lane-dense, zero-padded operands ----------------
    # NOTE: A_hat is cast to bf16 for the MXU (matches the bf16 reference);
    # keep it f32 if higher aggregation accuracy is needed.
    a_pad = jnp.zeros((n_pad, n_pad), jnp.float32).at[:n, :n].set(a_hat)
    a_pad = a_pad.astype(jnp.bfloat16)
    feat_pad = jnp.zeros((n_pad, f0_pad), jnp.float32)
    feat_pad = feat_pad.at[:n, :dims[0]].set(features).astype(jnp.bfloat16)

    w0_pad = jnp.zeros((f0_pad, f_work), jnp.float32)
    w0_pad = w0_pad.at[:dims[0], :dims[1]].set(weights[0]).astype(jnp.bfloat16)

    n_rest = max(nlayer - 1, 1)
    w_rest = jnp.zeros((n_rest, f_work, f_work), jnp.float32)
    for idx in range(1, nlayer):
        w = weights[idx]
        w_rest = w_rest.at[idx - 1, :w.shape[0], :w.shape[1]].set(w)
    w_rest = w_rest.astype(jnp.bfloat16)

    b_all = jnp.zeros((nlayer, 1, f_work), jnp.float32)
    for idx, b in enumerate(biases):
        b_all = b_all.at[idx, :, :b.shape[1]].set(b)

    # ---------------- BlockSpecs ----------------
    if a_resident:
        # A_hat DMA'd once, VMEM-resident, single-buffered.
        a_spec = _const_spec((n_pad, n_pad), lambda l, i: (0, 0),
                             single_buffer_constants)
    else:
        # Streamed-A fallback for large graphs: row block re-read per step.
        a_spec = pl.BlockSpec((tm, n_pad), lambda l, i: (i, 0))
    feat_spec = _const_spec((n_pad, f0_pad), lambda l, i: (0, 0),
                            single_buffer_constants)
    w0_spec = _const_spec((f0_pad, f_work), lambda l, i: (0, 0),
                          single_buffer_constants)
    wl_spec = pl.BlockSpec((1, f_work, f_work),
                           lambda l, i: (jnp.maximum(l - 1, 0), 0, 0))
    b_spec = pl.BlockSpec((1, 1, f_work), lambda l, i: (l, 0, 0))
    out_spec = _const_spec((n_pad, c_pad), lambda l, i: (0, 0),
                           single_buffer_constants)

    kernel = _make_fused_kernel(nlayer, nclass, c_pad, tm, a_resident)
    out_pad = pl.pallas_call(
        kernel,
        out_shape=jax.ShapeDtypeStruct((n_pad, c_pad), jnp.float32),
        grid_spec=pltpu.PrefetchScalarGridSpec(
            num_scalar_prefetch=0,
            grid=(nlayer, n_pad // tm),
            in_specs=[a_spec, feat_spec, w0_spec, wl_spec, b_spec],
            out_specs=out_spec,
            scratch_shapes=[
                pltpu.VMEM((2, n_pad, f_work), jnp.bfloat16),   # H ping-pong
                pltpu.VMEM((n_pad, f_work), jnp.bfloat16),      # per-layer HW
            ],
        ),
        compiler_params=pltpu.CompilerParams(
            # Layers are sequential and row tiles carry state through per-core
            # VMEM scratch, so both axes must stay "arbitrary" in this design.
            dimension_semantics=("arbitrary", "arbitrary"),
            vmem_limit_bytes=vmem_limit,
        ),
    )(a_pad, feat_pad, w0_pad, w_rest, b_all)
    return out_pad[:n, :nclass]


# ----------------------------------------------------------------------------
# Plain-JAX glue: parameter init, adjacency construction, top-level forward.
# ----------------------------------------------------------------------------
def init_params(key, nfeat, nhid, nclass, nlayer):
    dims = [nfeat] + [nhid] * (nlayer - 1) + [nclass]
    params = []
    for idx in range(nlayer):
        key, wk = jax.random.split(key)
        fan_in, fan_out = dims[idx], dims[idx + 1]
        scale = jnp.sqrt(2.0 / (fan_in + fan_out))  # Glorot-like, deterministic
        w = scale * jax.random.normal(wk, (fan_in, fan_out), dtype=jnp.float32)
        b = jnp.zeros((1, fan_out), dtype=jnp.float32)
        params.append((w, b))
    return params


def build_normalized_adj(edge_index, num_nodes):
    # A_hat = D^{-1/2} (A + A^T + I) D^{-1/2}   (binary adjacency from edge_index)
    src, dst = edge_index[0], edge_index[1]
    a = jnp.zeros((num_nodes, num_nodes), dtype=jnp.float32)
    a = a.at[src, dst].set(1.0)
    a = jnp.maximum(a, a.T)
    a = a + jnp.eye(num_nodes, dtype=jnp.float32)
    a = jnp.minimum(a, 1.0)
    deg = jnp.sum(a, axis=-1)
    d_inv_sqrt = 1.0 / jnp.sqrt(jnp.maximum(deg, 1e-12))
    return a * d_inv_sqrt[:, None] * d_inv_sqrt[None, :]


def mpnn_forward(params, features, edge_index, single_buffer_constants=True):
    n = features.shape[0]
    a_hat = build_normalized_adj(edge_index, n)
    weights = [w for (w, _) in params]
    biases = [b for (_, b) in params]
    nclass = weights[-1].shape[1]
    return gnn_fused_forward(a_hat, features.astype(jnp.float32),
                             weights, biases, nclass,
                             single_buffer_constants=single_buffer_constants)


def mpnn_forward_ref(params, features, edge_index):
    """Pure-JAX reference mirroring the kernel's precision and matmul order."""
    n = features.shape[0]
    a = build_normalized_adj(edge_index, n).astype(jnp.bfloat16)
    h = features.astype(jnp.bfloat16)
    nlayer = len(params)
    for idx, (w, b) in enumerate(params):
        hw = jnp.dot(h, w.astype(jnp.bfloat16),
                     preferred_element_type=jnp.float32).astype(jnp.bfloat16)
        out = jnp.dot(a, hw, preferred_element_type=jnp.float32) + b
        if idx < nlayer - 1:
            h = jnp.maximum(out, 0.0).astype(jnp.bfloat16)
        else:
            return jax.nn.log_softmax(out, axis=-1)


# ----------------------------------------------------------------------------
# Demo
# ----------------------------------------------------------------------------
if __name__ == "__main__":
    nfeat, nhid, nclass, nlayer = 8, 32, 4, 3
    num_nodes, num_edges = 16, 40

    key = jax.random.PRNGKey(0)
    k_feat, k_src, k_dst, k_param = jax.random.split(key, 4)

    features = jax.random.normal(k_feat, (num_nodes, nfeat), dtype=jnp.float32)
    edge_index = jnp.stack(
        [
            jax.random.randint(k_src, (num_edges,), 0, num_nodes),
            jax.random.randint(k_dst, (num_edges,), 0, num_nodes),
        ],
        axis=0,
    ).astype(jnp.int32)

    params = init_params(k_param, nfeat, nhid, nclass, nlayer)

    def run(single_buffer):
        fwd = jax.jit(functools.partial(
            mpnn_forward, params, single_buffer_constants=single_buffer))
        return jax.block_until_ready(fwd(features, edge_index))

    try:
        out = run(True)
    except Exception:
        # Fallback for JAX builds that reject pl.Buffered(1) on pallas_call
        # block specs; identical semantics, just default double-buffering.
        out = run(False)

    assert out.shape == (num_nodes, nclass)
    # rows of log_softmax output must exp-sum to 1
    assert jnp.allclose(jnp.sum(jnp.exp(out), axis=-1), 1.0, atol=1e-5)
    # match a pure-JAX reference with the same mixed precision / matmul order
    ref = mpnn_forward_ref(params, features, edge_index)
    assert jnp.allclose(out, ref, atol=5e-2, rtol=5e-2), float(
        jnp.max(jnp.abs(out - ref)))
    print("KERNEL_OK")
</pallas_src>

<mosaic_0001>
module attributes {stable_mosaic.version = 11 : i64} {
  func.func @kernel(%arg0: i32, %arg1: i32, %arg2: memref<128x128xbf16, #tpu.memory_space<vmem>>, %arg3: memref<128x128xbf16, #tpu.memory_space<vmem>>, %arg4: memref<128x128xbf16, #tpu.memory_space<vmem>>, %arg5: memref<1x128x128xbf16, #tpu.memory_space<vmem>>, %arg6: memref<1x1x128xf32, #tpu.memory_space<vmem>>, %arg7: memref<128x128xf32, #tpu.memory_space<vmem>>, %arg8: memref<2x128x128xbf16, #tpu.memory_space<vmem>>, %arg9: memref<128x128xbf16, #tpu.memory_space<vmem>>) attributes {dimension_semantics = [#tpu.dimension_semantics<arbitrary>, #tpu.dimension_semantics<arbitrary>], iteration_bounds = array<i64: 3, 1>, scalar_prefetch = 0 : i64, scratch_operands = 2 : i64, tpu.core_type = #tpu.core_type<tc>, window_params = [{pipeline_mode = #tpu.pipeline_mode<synchronous>, transform_indices = @transform_0, window_bounds = array<i64: 128, 128>}, {pipeline_mode = #tpu.pipeline_mode<synchronous>, transform_indices = @transform_1, window_bounds = array<i64: 128, 128>}, {pipeline_mode = #tpu.pipeline_mode<synchronous>, transform_indices = @transform_2, window_bounds = array<i64: 128, 128>}, {transform_indices = @transform_3, window_bounds = array<i64: 1, 128, 128>}, {transform_indices = @transform_4, window_bounds = array<i64: 1, 1, 128>}, {pipeline_mode = #tpu.pipeline_mode<synchronous>, transform_indices = @transform_5, window_bounds = array<i64: 128, 128>}]} {
    %c128_i32 = arith.constant 128 : i32
    %0 = arith.muli %arg1, %c128_i32 : i32
    %1 = tpu.assume_multiple %0, 128 : i32
    %c0_i32 = arith.constant 0 : i32
    %2 = arith.cmpi eq, %arg1, %c0_i32 : i32
    %c0_i32_0 = arith.constant 0 : i32
    %3 = arith.cmpi eq, %arg0, %c0_i32_0 : i32
    %4 = arith.andi %2, %3 : i1
    %5 = arith.extui %4 : i1 to i32
    %c0_i32_1 = arith.constant 0 : i32
    %6 = arith.cmpi ne, %5, %c0_i32_1 : i32
    scf.if %6 {
      %c0_13 = arith.constant 0 : index
      %c0_14 = arith.constant 0 : index
      %26 = vector.load %arg3[%c0_13, %c0_14] : memref<128x128xbf16, #tpu.memory_space<vmem>>, vector<128x128xbf16>
      %c0_15 = arith.constant 0 : index
      %c0_16 = arith.constant 0 : index
      %27 = vector.load %arg4[%c0_15, %c0_16] : memref<128x128xbf16, #tpu.memory_space<vmem>>, vector<128x128xbf16>
      %cst_17 = arith.constant dense<0.000000e+00> : vector<128x128xf32>
      %28 = tpu.matmul %26, %27, %cst_17 {dimension_numbers = #tpu.dot_dimension_numbers<[1], [0], [0], [1], [0, 0, 1, 1], [], []>} : vector<128x128xbf16>, vector<128x128xbf16>, vector<128x128xf32> -> vector<128x128xf32>
      %29 = arith.truncf %28 : vector<128x128xf32> to vector<128x128xbf16>
      %c0_18 = arith.constant 0 : index
      %c0_19 = arith.constant 0 : index
      %30 = vector.load %arg9[%c0_18, %c0_19] : memref<128x128xbf16, #tpu.memory_space<vmem>>, vector<128x128xbf16>
      tpu.vector_store %arg9[%c0_18, %c0_19], %29 {strides = array<i32>} : memref<128x128xbf16, #tpu.memory_space<vmem>>, vector<128x128xbf16>,
    } else {
    }
    %c0_i32_2 = arith.constant 0 : i32
    %7 = arith.cmpi eq, %arg1, %c0_i32_2 : i32
    %c0_i32_3 = arith.constant 0 : i32
    %8 = arith.cmpi sgt, %arg0, %c0_i32_3 : i32
    %9 = arith.andi %7, %8 : i1
    %10 = arith.extui %9 : i1 to i32
    %c0_i32_4 = arith.constant 0 : i32
    %11 = arith.cmpi ne, %10, %c0_i32_4 : i32
    scf.if %11 {
      %c1_i32 = arith.constant 1 : i32
      %26 = arith.addi %arg0, %c1_i32 : i32
      %c2_i32_13 = arith.constant 2 : i32
      %c0_i32_14 = arith.constant 0 : i32
      %27 = arith.cmpi eq, %c2_i32_13, %c0_i32_14 : i32
      %c1_i32_15 = arith.constant 1 : i32
      %28 = arith.select %27, %c1_i32_15, %c2_i32_13 : i32
      %29 = arith.remsi %26, %28 : i32
      %c0_i32_16 = arith.constant 0 : i32
      %30 = arith.cmpi ne, %29, %c0_i32_16 : i32
      %c0_i32_17 = arith.constant 0 : i32
      %31 = arith.cmpi slt, %29, %c0_i32_17 : i32
      %c0_i32_18 = arith.constant 0 : i32
      %32 = arith.cmpi slt, %28, %c0_i32_18 : i32
      %33 = arith.xori %31, %32 : i1
      %34 = arith.andi %33, %30 : i1
      %35 = arith.addi %29, %28 : i32
      %36 = arith.select %34, %35, %29 : i32
      %37 = arith.index_cast %36 : i32 to index
      %c0_19 = arith.constant 0 : index
      %c0_20 = arith.constant 0 : index
      %38 = vector.load %arg8[%37, %c0_19, %c0_20] : memref<2x128x128xbf16, #tpu.memory_space<vmem>>, vector<1x128x128xbf16>
      %39 = vector.shape_cast %38 : vector<1x128x128xbf16> to vector<128x128xbf16>
      %c0_21 = arith.constant 0 : index
      %c0_22 = arith.constant 0 : index
      %c0_23 = arith.constant 0 : index
      %40 = vector.load %arg5[%c0_21, %c0_22, %c0_23] : memref<1x128x128xbf16, #tpu.memory_space<vmem>>, vector<1x128x128xbf16>
      %41 = vector.shape_cast %40 : vector<1x128x128xbf16> to vector<128x128xbf16>
      %cst_24 = arith.constant dense<0.000000e+00> : vector<128x128xf32>
      %42 = tpu.matmul %39, %41, %cst_24 {dimension_numbers = #tpu.dot_dimension_numbers<[1], [0], [0], [1], [0, 0, 1, 1], [], []>} : vector<128x128xbf16>, vector<128x128xbf16>, vector<128x128xf32> -> vector<128x128xf32>
      %43 = arith.truncf %42 : vector<128x128xf32> to vector<128x128xbf16>
      %c0_25 = arith.constant 0 : index
      %c0_26 = arith.constant 0 : index
      %44 = vector.load %arg9[%c0_25, %c0_26] : memref<128x128xbf16, #tpu.memory_space<vmem>>, vector<128x128xbf16>
      tpu.vector_store %arg9[%c0_25, %c0_26], %43 {strides = array<i32>} : memref<128x128xbf16, #tpu.memory_space<vmem>>, vector<128x128xbf16>,
    } else {
    }
    %12 = arith.index_cast %1 : i32 to index
    %c0 = arith.constant 0 : index
    %13 = vector.load %arg2[%12, %c0] : memref<128x128xbf16, #tpu.memory_space<vmem>>, vector<128x128xbf16>
    %c0_5 = arith.constant 0 : index
    %c0_6 = arith.constant 0 : index
    %14 = vector.load %arg9[%c0_5, %c0_6] : memref<128x128xbf16, #tpu.memory_space<vmem>>, vector<128x128xbf16>
    %cst = arith.constant dense<0.000000e+00> : vector<128x128xf32>
    %15 = tpu.matmul %13, %14, %cst {dimension_numbers = #tpu.dot_dimension_numbers<[1], [0], [0], [1], [0, 0, 1, 1], [], []>} : vector<128x128xbf16>, vector<128x128xbf16>, vector<128x128xf32> -> vector<128x128xf32>
    %c0_7 = arith.constant 0 : index
    %c0_8 = arith.constant 0 : index
    %c0_9 = arith.constant 0 : index
    %16 = vector.load %arg6[%c0_7, %c0_8, %c0_9] : memref<1x1x128xf32, #tpu.memory_space<vmem>>, vector<1x1x128xf32>
    %17 = vector.shape_cast %16 : vector<1x1x128xf32> to vector<1x128xf32>
    %18 = vector.broadcast %17 : vector<1x128xf32> to vector<128x128xf32>
    %19 = arith.addf %15, %18 : vector<128x128xf32>
    %c2_i32 = arith.constant 2 : i32
    %20 = arith.cmpi slt, %arg0, %c2_i32 : i32
    %21 = arith.extui %20 : i1 to i32
    %c0_i32_10 = arith.constant 0 : i32
    %22 = arith.cmpi ne, %21, %c0_i32_10 : i32
    scf.if %22 {
      %cst_13 = arith.constant 0.000000e+00 : f32
      %26 = vector.broadcast %cst_13 : f32 to vector<128x128xf32>
      %27 = arith.maximumf %19, %26 : vector<128x128xf32>
      %28 = arith.truncf %27 : vector<128x128xf32> to vector<128x128xbf16>
      %c2_i32_14 = arith.constant 2 : i32
      %c0_i32_15 = arith.constant 0 : i32
      %29 = arith.cmpi eq, %c2_i32_14, %c0_i32_15 : i32
      %c1_i32 = arith.constant 1 : i32
      %30 = arith.select %29, %c1_i32, %c2_i32_14 : i32
      %31 = arith.remsi %arg0, %30 : i32
      %c0_i32_16 = arith.constant 0 : i32
      %32 = arith.cmpi ne, %31, %c0_i32_16 : i32
      %c0_i32_17 = arith.constant 0 : i32
      %33 = arith.cmpi slt, %31, %c0_i32_17 : i32
      %c0_i32_18 = arith.constant 0 : i32
      %34 = arith.cmpi slt, %30, %c0_i32_18 : i32
      %35 = arith.xori %33, %34 : i1
      %36 = arith.andi %35, %32 : i1
      %37 = arith.addi %31, %30 : i32
      %38 = arith.select %36, %37, %31 : i32
      %39 = arith.index_cast %38 : i32 to index
      %40 = arith.index_cast %1 : i32 to index
      %c0_19 = arith.constant 0 : index
      %41 = vector.load %arg8[%39, %40, %c0_19] : memref<2x128x128xbf16, #tpu.memory_space<vmem>>, vector<1x128x128xbf16>
      %42 = vector.shape_cast %41 : vector<1x128x128xbf16> to vector<128x128xbf16>
      %43 = vector.shape_cast %28 : vector<128x128xbf16> to vector<1x128x128xbf16>
      tpu.vector_store %arg8[%39, %40, %c0_19], %43 {strides = array<i32>} : memref<2x128x128xbf16, #tpu.memory_space<vmem>>, vector<1x128x128xbf16>,
    } else {
    }
    %c2_i32_11 = arith.constant 2 : i32
    %23 = arith.cmpi eq, %arg0, %c2_i32_11 : i32
    %24 = arith.extui %23 : i1 to i32
    %c0_i32_12 = arith.constant 0 : i32
    %25 = arith.cmpi ne, %24, %c0_i32_12 : i32
    scf.if %25 {
      %26 = tpu.iota {dimensions = array<i32: 1>} : vector<128x128xi32>
      %c4_i32 = arith.constant 4 : i32
      %27 = vector.broadcast %c4_i32 : i32 to vector<128x128xi32>
      %28 = arith.cmpi slt, %26, %27 : vector<128x128xi32>
      %cst_13 = arith.constant 0xFF800000 : f32
      %29 = vector.broadcast %cst_13 : f32 to vector<128x128xf32>
      %30 = arith.select %28, %19, %29 : vector<128x128xi1>, vector<128x128xf32>
      %cst_14 = arith.constant dense<0xFF800000> : vector<128xf32>
      %31 = vector.multi_reduction <maximumf>, %30, %cst_14 [1] : vector<128x128xf32> to vector<128xf32>
      %32 = vector.shape_cast %31 : vector<128xf32> to vector<128x1xf32>
      %33 = vector.broadcast %32 : vector<128x1xf32> to vector<128x128xf32>
      %34 = arith.subf %30, %33 : vector<128x128xf32>
      %35 = math.exp %34 : vector<128x128xf32>
      %cst_15 = arith.constant dense<0.000000e+00> : vector<128xf32>
      %36 = vector.multi_reduction <add>, %35, %cst_15 [1] : vector<128x128xf32> to vector<128xf32>
      %37 = vector.shape_cast %36 : vector<128xf32> to vector<128x1xf32>
      %38 = math.log %37 : vector<128x1xf32>
      %39 = vector.broadcast %32 : vector<128x1xf32> to vector<128x128xf32>
      %40 = arith.subf %19, %39 : vector<128x128xf32>
      %41 = vector.broadcast %38 : vector<128x1xf32> to vector<128x128xf32>
      %42 = arith.subf %40, %41 : vector<128x128xf32>
      %cst_16 = arith.constant 0.000000e+00 : f32
      %43 = vector.broadcast %cst_16 : f32 to vector<128x128xf32>
      %44 = arith.select %28, %42, %43 : vector<128x128xi1>, vector<128x128xf32>
      %45 = arith.index_cast %1 : i32 to index
      %c0_17 = arith.constant 0 : index
      %46 = vector.load %arg7[%45, %c0_17] : memref<128x128xf32, #tpu.memory_space<vmem>>, vector<128x128xf32>
      tpu.vector_store %arg7[%45, %c0_17], %44 {strides = array<i32>} : memref<128x128xf32, #tpu.memory_space<vmem>>, vector<128x128xf32>,
    } else {
    }
    return
  }
  func.func @transform_0(%arg0: i32, %arg1: i32) -> (i32, i32) {
    %c0_i32 = arith.constant 0 : i32
    %c0_i32_0 = arith.constant 0 : i32
    %c0_i32_1 = arith.constant 0 : i32
    return %c0_i32, %c0_i32_0 : i32, i32
  }
  func.func @transform_1(%arg0: i32, %arg1: i32) -> (i32, i32) {
    %c0_i32 = arith.constant 0 : i32
    %c0_i32_0 = arith.constant 0 : i32
    %c0_i32_1 = arith.constant 0 : i32
    return %c0_i32, %c0_i32_0 : i32, i32
  }
  func.func @transform_2(%arg0: i32, %arg1: i32) -> (i32, i32) {
    %c0_i32 = arith.constant 0 : i32
    %c0_i32_0 = arith.constant 0 : i32
    %c0_i32_1 = arith.constant 0 : i32
    return %c0_i32, %c0_i32_0 : i32, i32
  }
  func.func @transform_3(%arg0: i32, %arg1: i32) -> (i32, i32, i32) {
    %c1_i32 = arith.constant 1 : i32
    %0 = arith.subi %arg0, %c1_i32 : i32
    %c0_i32 = arith.constant 0 : i32
    %1 = arith.maxsi %0, %c0_i32 : i32
    %c0_i32_0 = arith.constant 0 : i32
    %c0_i32_1 = arith.constant 0 : i32
    %c0_i32_2 = arith.constant 0 : i32
    return %1, %c0_i32_0, %c0_i32_1 : i32, i32, i32
  }
  func.func @transform_4(%arg0: i32, %arg1: i32) -> (i32, i32, i32) {
    %c0_i32 = arith.constant 0 : i32
    %c0_i32_0 = arith.constant 0 : i32
    %c0_i32_1 = arith.constant 0 : i32
    return %arg0, %c0_i32, %c0_i32_0 : i32, i32, i32
  }
  func.func @transform_5(%arg0: i32, %arg1: i32) -> (i32, i32) {
    %c0_i32 = arith.constant 0 : i32
    %c0_i32_0 = arith.constant 0 : i32
    %c0_i32_1 = arith.constant 0 : i32
    return %c0_i32, %c0_i32_0 : i32, i32
  }
}

module attributes {stable_mosaic.version = 11 : i64} {
  func.func @kernel(%arg0: i32, %arg1: i32, %arg2: memref<128x128xbf16, #tpu.memory_space<vmem>>, %arg3: memref<128x128xbf16, #tpu.memory_space<vmem>>, %arg4: memref<128x128xbf16, #tpu.memory_space<vmem>>, %arg5: memref<1x128x128xbf16, #tpu.memory_space<vmem>>, %arg6: memref<1x1x128xf32, #tpu.memory_space<vmem>>, %arg7: memref<128x128xf32, #tpu.memory_space<vmem>>, %arg8: memref<2x128x128xbf16, #tpu.memory_space<vmem>>, %arg9: memref<128x128xbf16, #tpu.memory_space<vmem>>) attributes {dimension_semantics = [#tpu.dimension_semantics<arbitrary>, #tpu.dimension_semantics<arbitrary>], iteration_bounds = array<i64: 3, 1>, scalar_prefetch = 0 : i64, scratch_operands = 2 : i64, tpu.core_type = #tpu.core_type<tc>, window_params = [{pipeline_mode = #tpu.pipeline_mode<synchronous>, transform_indices = @transform_0, window_bounds = array<i64: 128, 128>}, {pipeline_mode = #tpu.pipeline_mode<synchronous>, transform_indices = @transform_1, window_bounds = array<i64: 128, 128>}, {pipeline_mode = #tpu.pipeline_mode<synchronous>, transform_indices = @transform_2, window_bounds = array<i64: 128, 128>}, {transform_indices = @transform_3, window_bounds = array<i64: 1, 128, 128>}, {transform_indices = @transform_4, window_bounds = array<i64: 1, 1, 128>}, {pipeline_mode = #tpu.pipeline_mode<synchronous>, transform_indices = @transform_5, window_bounds = array<i64: 128, 128>}]} {
    %c128_i32 = arith.constant 128 : i32
    %0 = arith.muli %arg1, %c128_i32 : i32
    %1 = tpu.assume_multiple %0, 128 : i32
    %c0_i32 = arith.constant 0 : i32
    %2 = arith.cmpi eq, %arg1, %c0_i32 : i32
    %c0_i32_0 = arith.constant 0 : i32
    %3 = arith.cmpi eq, %arg0, %c0_i32_0 : i32
    %4 = arith.andi %2, %3 : i1
    %5 = arith.extui %4 : i1 to i32
    %c0_i32_1 = arith.constant 0 : i32
    %6 = arith.cmpi ne, %5, %c0_i32_1 : i32
    scf.if %6 {
      %c0_13 = arith.constant 0 : index
      %c0_14 = arith.constant 0 : index
      %26 = vector.load %arg3[%c0_13, %c0_14] : memref<128x128xbf16, #tpu.memory_space<vmem>>, vector<128x128xbf16>
      %c0_15 = arith.constant 0 : index
      %c0_16 = arith.constant 0 : index
      %27 = vector.load %arg4[%c0_15, %c0_16] : memref<128x128xbf16, #tpu.memory_space<vmem>>, vector<128x128xbf16>
      %cst_17 = arith.constant dense<0.000000e+00> : vector<128x128xf32>
      %28 = tpu.matmul %26, %27, %cst_17 {dimension_numbers = #tpu.dot_dimension_numbers<[1], [0], [0], [1], [0, 0, 1, 1], [], []>} : vector<128x128xbf16>, vector<128x128xbf16>, vector<128x128xf32> -> vector<128x128xf32>
      %29 = arith.truncf %28 : vector<128x128xf32> to vector<128x128xbf16>
      %c0_18 = arith.constant 0 : index
      %c0_19 = arith.constant 0 : index
      %30 = vector.load %arg9[%c0_18, %c0_19] : memref<128x128xbf16, #tpu.memory_space<vmem>>, vector<128x128xbf16>
      tpu.vector_store %arg9[%c0_18, %c0_19], %29 {strides = array<i32>} : memref<128x128xbf16, #tpu.memory_space<vmem>>, vector<128x128xbf16>,
    } else {
    }
    %c0_i32_2 = arith.constant 0 : i32
    %7 = arith.cmpi eq, %arg1, %c0_i32_2 : i32
    %c0_i32_3 = arith.constant 0 : i32
    %8 = arith.cmpi sgt, %arg0, %c0_i32_3 : i32
    %9 = arith.andi %7, %8 : i1
    %10 = arith.extui %9 : i1 to i32
    %c0_i32_4 = arith.constant 0 : i32
    %11 = arith.cmpi ne, %10, %c0_i32_4 : i32
    scf.if %11 {
      %c1_i32 = arith.constant 1 : i32
      %26 = arith.addi %arg0, %c1_i32 : i32
      %c2_i32_13 = arith.constant 2 : i32
      %c0_i32_14 = arith.constant 0 : i32
      %27 = arith.cmpi eq, %c2_i32_13, %c0_i32_14 : i32
      %c1_i32_15 = arith.constant 1 : i32
      %28 = arith.select %27, %c1_i32_15, %c2_i32_13 : i32
      %29 = arith.remsi %26, %28 : i32
      %c0_i32_16 = arith.constant 0 : i32
      %30 = arith.cmpi ne, %29, %c0_i32_16 : i32
      %c0_i32_17 = arith.constant 0 : i32
      %31 = arith.cmpi slt, %29, %c0_i32_17 : i32
      %c0_i32_18 = arith.constant 0 : i32
      %32 = arith.cmpi slt, %28, %c0_i32_18 : i32
      %33 = arith.xori %31, %32 : i1
      %34 = arith.andi %33, %30 : i1
      %35 = arith.addi %29, %28 : i32
      %36 = arith.select %34, %35, %29 : i32
      %37 = arith.index_cast %36 : i32 to index
      %c0_19 = arith.constant 0 : index
      %c0_20 = arith.constant 0 : index
      %38 = vector.load %arg8[%37, %c0_19, %c0_20] : memref<2x128x128xbf16, #tpu.memory_space<vmem>>, vector<1x128x128xbf16>
      %39 = vector.shape_cast %38 : vector<1x128x128xbf16> to vector<128x128xbf16>
      %c0_21 = arith.constant 0 : index
      %c0_22 = arith.constant 0 : index
      %c0_23 = arith.constant 0 : index
      %40 = vector.load %arg5[%c0_21, %c0_22, %c0_23] : memref<1x128x128xbf16, #tpu.memory_space<vmem>>, vector<1x128x128xbf16>
      %41 = vector.shape_cast %40 : vector<1x128x128xbf16> to vector<128x128xbf16>
      %cst_24 = arith.constant dense<0.000000e+00> : vector<128x128xf32>
      %42 = tpu.matmul %39, %41, %cst_24 {dimension_numbers = #tpu.dot_dimension_numbers<[1], [0], [0], [1], [0, 0, 1, 1], [], []>} : vector<128x128xbf16>, vector<128x128xbf16>, vector<128x128xf32> -> vector<128x128xf32>
      %43 = arith.truncf %42 : vector<128x128xf32> to vector<128x128xbf16>
      %c0_25 = arith.constant 0 : index
      %c0_26 = arith.constant 0 : index
      %44 = vector.load %arg9[%c0_25, %c0_26] : memref<128x128xbf16, #tpu.memory_space<vmem>>, vector<128x128xbf16>
      tpu.vector_store %arg9[%c0_25, %c0_26], %43 {strides = array<i32>} : memref<128x128xbf16, #tpu.memory_space<vmem>>, vector<128x128xbf16>,
    } else {
    }
    %12 = arith.index_cast %1 : i32 to index
    %c0 = arith.constant 0 : index
    %13 = vector.load %arg2[%12, %c0] : memref<128x128xbf16, #tpu.memory_space<vmem>>, vector<128x128xbf16>
    %c0_5 = arith.constant 0 : index
    %c0_6 = arith.constant 0 : index
    %14 = vector.load %arg9[%c0_5, %c0_6] : memref<128x128xbf16, #tpu.memory_space<vmem>>, vector<128x128xbf16>
    %cst = arith.constant dense<0.000000e+00> : vector<128x128xf32>
    %15 = tpu.matmul %13, %14, %cst {dimension_numbers = #tpu.dot_dimension_numbers<[1], [0], [0], [1], [0, 0, 1, 1], [], []>} : vector<128x128xbf16>, vector<128x128xbf16>, vector<128x128xf32> -> vector<128x128xf32>
    %c0_7 = arith.constant 0 : index
    %c0_8 = arith.constant 0 : index
    %c0_9 = arith.constant 0 : index
    %16 = vector.load %arg6[%c0_7, %c0_8, %c0_9] : memref<1x1x128xf32, #tpu.memory_space<vmem>>, vector<1x1x128xf32>
    %17 = vector.shape_cast %16 : vector<1x1x128xf32> to vector<1x128xf32>
    %18 = vector.broadcast %17 : vector<1x128xf32> to vector<128x128xf32>
    %19 = arith.addf %15, %18 : vector<128x128xf32>
    %c2_i32 = arith.constant 2 : i32
    %20 = arith.cmpi slt, %arg0, %c2_i32 : i32
    %21 = arith.extui %20 : i1 to i32
    %c0_i32_10 = arith.constant 0 : i32
    %22 = arith.cmpi ne, %21, %c0_i32_10 : i32
    scf.if %22 {
      %cst_13 = arith.constant 0.000000e+00 : f32
      %26 = vector.broadcast %cst_13 : f32 to vector<128x128xf32>
      %27 = arith.maximumf %19, %26 : vector<128x128xf32>
      %28 = arith.truncf %27 : vector<128x128xf32> to vector<128x128xbf16>
      %c2_i32_14 = arith.constant 2 : i32
      %c0_i32_15 = arith.constant 0 : i32
      %29 = arith.cmpi eq, %c2_i32_14, %c0_i32_15 : i32
      %c1_i32 = arith.constant 1 : i32
      %30 = arith.select %29, %c1_i32, %c2_i32_14 : i32
      %31 = arith.remsi %arg0, %30 : i32
      %c0_i32_16 = arith.constant 0 : i32
      %32 = arith.cmpi ne, %31, %c0_i32_16 : i32
      %c0_i32_17 = arith.constant 0 : i32
      %33 = arith.cmpi slt, %31, %c0_i32_17 : i32
      %c0_i32_18 = arith.constant 0 : i32
      %34 = arith.cmpi slt, %30, %c0_i32_18 : i32
      %35 = arith.xori %33, %34 : i1
      %36 = arith.andi %35, %32 : i1
      %37 = arith.addi %31, %30 : i32
      %38 = arith.select %36, %37, %31 : i32
      %39 = arith.index_cast %38 : i32 to index
      %40 = arith.index_cast %1 : i32 to index
      %c0_19 = arith.constant 0 : index
      %41 = vector.load %arg8[%39, %40, %c0_19] : memref<2x128x128xbf16, #tpu.memory_space<vmem>>, vector<1x128x128xbf16>
      %42 = vector.shape_cast %41 : vector<1x128x128xbf16> to vector<128x128xbf16>
      %43 = vector.shape_cast %28 : vector<128x128xbf16> to vector<1x128x128xbf16>
      tpu.vector_store %arg8[%39, %40, %c0_19], %43 {strides = array<i32>} : memref<2x128x128xbf16, #tpu.memory_space<vmem>>, vector<1x128x128xbf16>,
    } else {
    }
    %c2_i32_11 = arith.constant 2 : i32
    %23 = arith.cmpi eq, %arg0, %c2_i32_11 : i32
    %24 = arith.extui %23 : i1 to i32
    %c0_i32_12 = arith.constant 0 : i32
    %25 = arith.cmpi ne, %24, %c0_i32_12 : i32
    scf.if %25 {
      %26 = tpu.iota {dimensions = array<i32: 1>} : vector<128x128xi32>
      %c4_i32 = arith.constant 4 : i32
      %27 = vector.broadcast %c4_i32 : i32 to vector<128x128xi32>
      %28 = arith.cmpi slt, %26, %27 : vector<128x128xi32>
      %cst_13 = arith.constant 0xFF800000 : f32
      %29 = vector.broadcast %cst_13 : f32 to vector<128x128xf32>
      %30 = arith.select %28, %19, %29 : vector<128x128xi1>, vector<128x128xf32>
      %cst_14 = arith.constant dense<0xFF800000> : vector<128xf32>
      %31 = vector.multi_reduction <maximumf>, %30, %cst_14 [1] : vector<128x128xf32> to vector<128xf32>
      %32 = vector.shape_cast %31 : vector<128xf32> to vector<128x1xf32>
      %33 = vector.broadcast %32 : vector<128x1xf32> to vector<128x128xf32>
      %34 = arith.subf %30, %33 : vector<128x128xf32>
      %35 = math.exp %34 : vector<128x128xf32>
      %cst_15 = arith.constant dense<0.000000e+00> : vector<128xf32>
      %36 = vector.multi_reduction <add>, %35, %cst_15 [1] : vector<128x128xf32> to vector<128xf32>
      %37 = vector.shape_cast %36 : vector<128xf32> to vector<128x1xf32>
      %38 = math.log %37 : vector<128x1xf32>
      %39 = vector.broadcast %32 : vector<128x1xf32> to vector<128x128xf32>
      %40 = arith.subf %19, %39 : vector<128x128xf32>
      %41 = vector.broadcast %38 : vector<128x1xf32> to vector<128x128xf32>
      %42 = arith.subf %40, %41 : vector<128x128xf32>
      %cst_16 = arith.constant 0.000000e+00 : f32
      %43 = vector.broadcast %cst_16 : f32 to vector<128x128xf32>
      %44 = arith.select %28, %42, %43 : vector<128x128xi1>, vector<128x128xf32>
      %45 = arith.index_cast %1 : i32 to index
      %c0_17 = arith.constant 0 : index
      %46 = vector.load %arg7[%45, %c0_17] : memref<128x128xf32, #tpu.memory_space<vmem>>, vector<128x128xf32>
      tpu.vector_store %arg7[%45, %c0_17], %44 {strides = array<i32>} : memref<128x128xf32, #tpu.memory_space<vmem>>, vector<128x128xf32>,
    } else {
    }
    return
  }
  func.func @transform_0(%arg0: i32, %arg1: i32) -> (i32, i32) {
    %c0_i32 = arith.constant 0 : i32
    %c0_i32_0 = arith.constant 0 : i32
    %c0_i32_1 = arith.constant 0 : i32
    return %c0_i32, %c0_i32_0 : i32, i32
  }
  func.func @transform_1(%arg0: i32, %arg1: i32) -> (i32, i32) {
    %c0_i32 = arith.constant 0 : i32
    %c0_i32_0 = arith.constant 0 : i32
    %c0_i32_1 = arith.constant 0 : i32
    return %c0_i32, %c0_i32_0 : i32, i32
  }
  func.func @transform_2(%arg0: i32, %arg1: i32) -> (i32, i32) {
    %c0_i32 = arith.constant 0 : i32
    %c0_i32_0 = arith.constant 0 : i32
    %c0_i32_1 = arith.constant 0 : i32
    return %c0_i32, %c0_i32_0 : i32, i32
  }
  func.func @transform_3(%arg0: i32, %arg1: i32) -> (i32, i32, i32) {
    %c1_i32 = arith.constant 1 : i32
    %0 = arith.subi %arg0, %c1_i32 : i32
    %c0_i32 = arith.constant 0 : i32
    %1 = arith.maxsi %0, %c0_i32 : i32
    %c0_i32_0 = arith.constant 0 : i32
    %c0_i32_1 = arith.constant 0 : i32
    %c0_i32_2 = arith.constant 0 : i32
    return %1, %c0_i32_0, %c0_i32_1 : i32, i32, i32
  }
  func.func @transform_4(%arg0: i32, %arg1: i32) -> (i32, i32, i32) {
    %c0_i32 = arith.constant 0 : i32
    %c0_i32_0 = arith.constant 0 : i32
    %c0_i32_1 = arith.constant 0 : i32
    return %arg0, %c0_i32, %c0_i32_0 : i32, i32, i32
  }
  func.func @transform_5(%arg0: i32, %arg1: i32) -> (i32, i32) {
    %c0_i32 = arith.constant 0 : i32
    %c0_i32_0 = arith.constant 0 : i32
    %c0_i32_1 = arith.constant 0 : i32
    return %c0_i32, %c0_i32_0 : i32, i32
  }
}

</mosaic_0001>

<llo_original>
// kernel: mpnn_forward.1
$region0: #{mpnn_forward.1}
  #allocation0 [shape = 'u32[]', space=smem, size = 0x4, offset = 0x4, fixed_abs, tag = 'smem constant byte address 0x4 - core index']
  #allocation1 [shape = 'u32[144,128]{1,0:T(1,128)}', space=vmem, size = 0x12000, scoped, tag = 'internal scratch']
  #allocation2 [shape = 'bf16[2,128,128]{2,1,0:T(16,128)(2,1)}', space=vmem, size = 0x10000, scoped, tag = 'scratch operand']
  #allocation3 [shape = 'bf16[128,128]{1,0:T(16,128)(2,1)}', space=vmem, size = 0x8000, scoped, tag = 'scratch operand']
  %s0 = inlined_call_operand.vmem [shape: bf16[128,128], index: 0, kind: input, shape index: {}]
  %s1 = inlined_call_operand.vmem [shape: bf16[128,128], index: 1, kind: input, shape index: {}]
  %s2 = inlined_call_operand.vmem [shape: bf16[128,128], index: 2, kind: input, shape index: {}]
  %s3 = inlined_call_operand.vmem [shape: bf16[2,128,128], index: 3, kind: input, shape index: {}]
  %s4 = inlined_call_operand.vmem [shape: f32[3,1,128], index: 4, kind: input, shape index: {}]
  %s5 = inlined_call_operand.vmem [shape: f32[128,128], index: 5, kind: output, shape index: {}]
  %s6 = sld [smem:[#allocation0]]
  $region69: #{mpnn_forward.1} parent=0
    _
  %s8 = ssub.s32 1, %s6
  %s9 = scalar_select 0, %s8, %s6
  loop: start=0, step=1, limit=5
  $region2: #{mpnn_forward.1} parent=0 // loop_pre_header
    _
  $region3: #{mpnn_forward.1} parent=0 // loop_header
    %s11 = sphi 0, %s15
    %p12 = scmp.ge.s32.totalorder %s11, 5
    %s18 = sphi 0, %s30
    %s19 = sphi 0, %s26
    %s20 = sphi 0, %s18
    %s21 = sphi 0, %s19
    %s22 = sphi 0, %s20
    %s23 = sphi 0, %s21
    %s31 = sphi 0, %s31
    %s33 = sphi 0, %s31
    %s34 = sphi 0, %s33
    %s48 = sphi 0, %s34
    %s52 = sphi 0, %s52
    %s54 = sphi 0, %s52
    %s55 = sphi 0, %s54
    %s69 = sphi 0, %s55
    %s73 = sphi 0, %s73
    %s75 = sphi 0, %s73
    %s76 = sphi 0, %s75
    %s90 = sphi 0, %s76
    %s102 = sphi 0, %s104
    %s105 = sphi 0, %s102
    %s106 = sphi 0, %s105
    %s122 = sphi 0, %s106
    %s128 = sphi 0, %s130
    %s131 = sphi 0, %s128
    %s132 = sphi 0, %s131
    %s148 = sphi 0, %s132
    %s152 = sphi 0, %s152
    %s154 = sphi 0, %s152
    %s155 = sphi 0, %s154
    %s169 = sphi 0, %s155
  $region4: #{mpnn_forward.1} parent=0 // loop_header_branch
    %14 = sbr.rel (%p12) target = $region8
  $region5: #{mpnn_forward.1} parent=0 // loop_body
    %s16 = ssub.s32 %s11, 1
    %s17 = ssub.s32 %s11, 2
    %s24 = sadd.s32 1, %s19
    %p25 = scmp.ge.s32.totalorder %s24, 1
    %s26 = scalar_select %p25, 0, %s24
    %s27 = sadd.s32 1, %s18
    %s28 = scalar_select %p25, %s27, %s18
    %p29 = scmp.ge.s32.totalorder %s28, 3
    %s30 = scalar_select %p29, 0, %s28
    %s32 = sadd.s32 %s31, 1
    %p35 = scmp.eq.s32.totalorder %s11, 2
    %p36 = scmp.ne.s32.totalorder %s31, %s33
    %p37 = scmp.eq.s32.totalorder %s11, 0
    %p38 = por %p36, %p37
    %p39 = scmp.ne.s32.totalorder %s31, %s33
    %p40 = scmp.eq.s32.totalorder %s16, 2
    %p41 = por %p39, %p40
    %p42 = scmp.ne.s32.totalorder %s33, %s34
    %p43 = scmp.eq.s32.totalorder %s16, 0
    %p44 = por %p42, %p43
    %p45 = scmp.ne.s32.totalorder %s33, %s34
    %p46 = scmp.eq.s32.totalorder %s17, 2
    %p47 = por %p45, %p46
    %p49 = scmp.ne.s32.totalorder %s34, %s48
    %p50 = scmp.eq.s32.totalorder %s17, 0
    %p51 = por %p49, %p50
    %s53 = sadd.s32 %s52, 1
    %p56 = scmp.eq.s32.totalorder %s11, 2
    %p57 = scmp.ne.s32.totalorder %s52, %s54
    %p58 = scmp.eq.s32.totalorder %s11, 0
    %p59 = por %p57, %p58
    %p60 = scmp.ne.s32.totalorder %s52, %s54
    %p61 = scmp.eq.s32.totalorder %s16, 2
    %p62 = por %p60, %p61
    %p63 = scmp.ne.s32.totalorder %s54, %s55
    %p64 = scmp.eq.s32.totalorder %s16, 0
    %p65 = por %p63, %p64
    %p66 = scmp.ne.s32.totalorder %s54, %s55
    %p67 = scmp.eq.s32.totalorder %s17, 2
    %p68 = por %p66, %p67
    %p70 = scmp.ne.s32.totalorder %s55, %s69
    %p71 = scmp.eq.s32.totalorder %s17, 0
    %p72 = por %p70, %p71
    %s74 = sadd.s32 %s73, 1
    %p77 = scmp.eq.s32.totalorder %s11, 2
    %p78 = scmp.ne.s32.totalorder %s73, %s75
    %p79 = scmp.eq.s32.totalorder %s11, 0
    %p80 = por %p78, %p79
    %p81 = scmp.ne.s32.totalorder %s73, %s75
    %p82 = scmp.eq.s32.totalorder %s16, 2
    %p83 = por %p81, %p82
    %p84 = scmp.ne.s32.totalorder %s75, %s76
    %p85 = scmp.eq.s32.totalorder %s16, 0
    %p86 = por %p84, %p85
    %p87 = scmp.ne.s32.totalorder %s75, %s76
    %p88 = scmp.eq.s32.totalorder %s17, 2
    %p89 = por %p87, %p88
    %p91 = scmp.ne.s32.totalorder %s76, %s90
    %p92 = scmp.eq.s32.totalorder %s17, 0
    %p93 = por %p91, %p92
    %s94 = ssub.s32 %s18, 1
    %p95 = scmp.gt.s32.totalorder %s94, 0
    %s96 = scalar_select %p95, %s94, 0
    %s97 = ssub.s32 %s30, 1
    %p98 = scmp.gt.s32.totalorder %s97, 0
    %s99 = scalar_select %p98, %s97, 0
    %s100 = ssub.s32 %s96, %s99
    %p101 = scmp.eq.s32.totalorder %s100, 0
    %s103 = sadd.s32 %s102, 1
    %s104 = scalar_select %p101, %s102, %s103
    %p107 = pneg %p101
    %p108 = scmp.eq.s32.totalorder %s11, 2
    %p109 = por %p107, %p108
    %p110 = scmp.ne.s32.totalorder %s102, %s105
    %p111 = scmp.eq.s32.totalorder %s11, 0
    %p112 = por %p110, %p111
    %p113 = scmp.ne.s32.totalorder %s102, %s105
    %p114 = scmp.eq.s32.totalorder %s16, 2
    %p115 = por %p113, %p114
    %p116 = scmp.ne.s32.totalorder %s105, %s106
    %p117 = scmp.eq.s32.totalorder %s16, 0
    %p118 = por %p116, %p117
    %p119 = scmp.ne.s32.totalorder %s105, %s106
    %p120 = scmp.eq.s32.totalorder %s17, 2
    %p121 = por %p119, %p120
    %p123 = scmp.ne.s32.totalorder %s106, %s122
    %p124 = scmp.eq.s32.totalorder %s17, 0
    %p125 = por %p123, %p124
    %s126 = ssub.s32 %s18, %s30
    %p127 = scmp.eq.s32.totalorder %s126, 0
    %s129 = sadd.s32 %s128, 1
    %s130 = scalar_select %p127, %s128, %s129
    %p133 = pneg %p127
    %p134 = scmp.eq.s32.totalorder %s11, 2
    %p135 = por %p133, %p134
    %p136 = scmp.ne.s32.totalorder %s128, %s131
    %p137 = scmp.eq.s32.totalorder %s11, 0
    %p138 = por %p136, %p137
    %p139 = scmp.ne.s32.totalorder %s128, %s131
    %p140 = scmp.eq.s32.totalorder %s16, 2
    %p141 = por %p139, %p140
    %p142 = scmp.ne.s32.totalorder %s131, %s132
    %p143 = scmp.eq.s32.totalorder %s16, 0
    %p144 = por %p142, %p143
    %p145 = scmp.ne.s32.totalorder %s131, %s132
    %p146 = scmp.eq.s32.totalorder %s17, 2
    %p147 = por %p145, %p146
    %p149 = scmp.ne.s32.totalorder %s132, %s148
    %p150 = scmp.eq.s32.totalorder %s17, 0
    %p151 = por %p149, %p150
    %s153 = sadd.s32 %s152, 1
    %p156 = scmp.eq.s32.totalorder %s11, 2
    %p157 = scmp.ne.s32.totalorder %s152, %s154
    %p158 = scmp.eq.s32.totalorder %s11, 0
    %p159 = por %p157, %p158
    %p160 = scmp.ne.s32.totalorder %s152, %s154
    %p161 = scmp.eq.s32.totalorder %s16, 2
    %p162 = por %p160, %p161
    %p163 = scmp.ne.s32.totalorder %s154, %s155
    %p164 = scmp.eq.s32.totalorder %s16, 0
    %p165 = por %p163, %p164
    %p166 = scmp.ne.s32.totalorder %s154, %s155
    %p167 = scmp.eq.s32.totalorder %s17, 2
    %p168 = por %p166, %p167
    %p170 = scmp.ne.s32.totalorder %s155, %s169
    %p171 = scmp.eq.s32.totalorder %s17, 0
    %p172 = por %p170, %p171
    %p173 = scmp.le.s32.totalorder 1, %s11
    %p174 = scmp.lt.s32.totalorder %s11, 4
    %p175 = pnand %p173, %p174
    %p176 = pneg %p175
    // Predicated region
    $region9: #{mpnn_forward.1} parent=5 // pred_check
      _
    $region10: #{mpnn_forward.1} parent=5 // pred_check_branch
      %178 = sbr.rel (%p175) target = $region12
    $region11: #{mpnn_forward.1} parent=5 // pred_region
      %s179 = ssub.s32 %s11, 1
      // Predicated region
      $region13: #{mpnn_forward.1} parent=11 // pred_check
        %p180 = pneg %p44
      $region14: #{mpnn_forward.1} parent=11 // pred_check_branch
        %182 = sbr.rel (%p180) target = $region16
      $region15: #{mpnn_forward.1} parent=11 // pred_region
        _
      $region16: #{mpnn_forward.1} parent=11 // pred_fallthru
        _
      // Predicated region
      $region17: #{mpnn_forward.1} parent=11 // pred_check
        %p183 = pneg %p65
      $region18: #{mpnn_forward.1} parent=11 // pred_check_branch
        %185 = sbr.rel (%p183) target = $region20
      $region19: #{mpnn_forward.1} parent=11 // pred_region
        _
      $region20: #{mpnn_forward.1} parent=11 // pred_fallthru
        _
      // Predicated region
      $region21: #{mpnn_forward.1} parent=11 // pred_check
        %p186 = pneg %p86
      $region22: #{mpnn_forward.1} parent=11 // pred_check_branch
        %188 = sbr.rel (%p186) target = $region24
      $region23: #{mpnn_forward.1} parent=11 // pred_region
        _
      $region24: #{mpnn_forward.1} parent=11 // pred_fallthru
        _
    $region12: #{mpnn_forward.1} parent=5 // pred_fallthru
      _
    %p189 = scmp.lt.s32.totalorder %s11, 3
    // Predicated region
    $region25: #{mpnn_forward.1} parent=5 // pred_check
      %p190 = pneg %p189
    $region26: #{mpnn_forward.1} parent=5 // pred_check_branch
      %192 = sbr.rel (%p190) target = $region28
    $region27: #{mpnn_forward.1} parent=5 // pred_region
      // Predicated region
      $region29: #{mpnn_forward.1} parent=27 // pred_check
        %p193 = pneg %p112
      $region30: #{mpnn_forward.1} parent=27 // pred_check_branch
        %195 = sbr.rel (%p193) target = $region32
      $region31: #{mpnn_forward.1} parent=27 // pred_region
        %s196 = ssub.s32 %s18, 1
        %p197 = scmp.gt.s32.totalorder %s196, 0
        %s198 = scalar_select %p197, %s196, 0
        %p199 = scmp.lt.s32.totalorder %s198, 1
        %s200 = scalar_select %p199, %s198, 1
        %s201 = smul.addr %s200, 16
        %s202 = smul.addr %s201, 4
        %s203 = scalar_lea.vmem %s3, %s202
        %s204 = ssub.s32 %s18, 1
        %p205 = scmp.gt.s32.totalorder %s204, 0
        %s206 = scalar_select %p205, %s204, 0
      $region32: #{mpnn_forward.1} parent=27 // pred_fallthru
        _
      // Predicated region
      $region33: #{mpnn_forward.1} parent=27 // pred_check
        %p207 = pneg %p138
      $region34: #{mpnn_forward.1} parent=27 // pred_check_branch
        %209 = sbr.rel (%p207) target = $region36
      $region35: #{mpnn_forward.1} parent=27 // pred_region
        %p210 = scmp.lt.s32.totalorder %s18, 2
        %s211 = scalar_select %p210, %s18, 2
        %s212 = scalar_lea.vmem %s4, %s211
      $region36: #{mpnn_forward.1} parent=27 // pred_fallthru
        _
    $region28: #{mpnn_forward.1} parent=5 // pred_fallthru
      _
    %p213 = scmp.le.s32.totalorder 1, %s11
    %p214 = scmp.lt.s32.totalorder %s11, 4
    %p215 = pnand %p213, %p214
    %p216 = pneg %p215
    // Predicated region
    $region37: #{mpnn_forward.1} parent=5 // pred_check
      _
    $region38: #{mpnn_forward.1} parent=5 // pred_check_branch
      %218 = sbr.rel (%p215) target = $region40
    $region39: #{mpnn_forward.1} parent=5 // pred_region
      %s219 = ssub.s32 %s11, 1
      %p220 = pneg %p44
      %p221 = pneg %p41
      %p222 = pneg %p65
      %p223 = pneg %p62
      %p224 = pneg %p86
      %p225 = pneg %p83
      %s226 = ssub.s32 %s20, 1
      %p227 = scmp.gt.s32.totalorder %s226, 0
      %s228 = scalar_select %p227, %s226, 0
      %p229 = scmp.lt.s32.totalorder %s228, 1
      %s230 = scalar_select %p229, %s228, 1
      %s231 = smul.addr %s230, 16
      %s232 = smul.addr %s231, 4
      %s233 = scalar_lea.vmem %s3, %s232
      %p234 = pneg %p118
      %p235 = pneg %p115
      %p236 = scmp.lt.s32.totalorder %s20, 2
      %s237 = scalar_select %p236, %s20, 2
      %s238 = scalar_lea.vmem %s4, %s237
      %p239 = pneg %p144
      %p240 = pneg %p141
      %p241 = pneg %p165
      %p242 = pneg %p162
      %s243 = ssub.s32 %s20, 1
      %p244 = scmp.gt.s32.totalorder %s243, 0
      %s245 = scalar_select %p244, %s243, 0
      %p246 = scmp.lt.s32.totalorder %s245, 1
      %s247 = scalar_select %p246, %s245, 1
      %s248 = smul.addr %s247, 16
      %s249 = smul.addr %s248, 4
      %s250 = scalar_lea.vmem %s3, %s249
      %s251 = ssub.s32 %s20, 1
      %p252 = scmp.gt.s32.totalorder %s251, 0
      %s253 = scalar_select %p252, %s251, 0
      %p254 = scmp.lt.s32.totalorder %s20, 2
      %s255 = scalar_select %p254, %s20, 2
      %s256 = scalar_lea.vmem %s4, %s255
      %s258 = smul.u32 %s21, 128
      %p259 = scmp.eq.s32.totalorder %s21, 0
      %p260 = scmp.eq.s32.totalorder %s20, 0
      %p261 = pnand %p259, %p260
      %p262 = pneg %p261
      // Predicated region
      $region41: #{mpnn_forward.1} parent=39 // pred_check
        _
      $region42: #{mpnn_forward.1} parent=39 // pred_check_branch
        %264 = sbr.rel (%p261) target = $region44
      $region43: #{mpnn_forward.1} parent=39 // pred_region
        %v265 = vld [vmem:[%s1] sm:$0xf]
        %v266 = vld [vmem:[%s1 + $0x4] sm:$0xf]
        %v267 = vld [vmem:[%s1 + $0x8] sm:$0xf]
        %v268 = vld [vmem:[%s1 + $0xc] sm:$0xf]
        %v269 = vld [vmem:[%s1 + $0x10] sm:$0xf]
        %v270 = vld [vmem:[%s1 + $0x14] sm:$0xf]
        %v271 = vld [vmem:[%s1 + $0x18] sm:$0xf]
        %v272 = vld [vmem:[%s1 + $0x1c] sm:$0xf]
        %v273 = vld [vmem:[%s1 + $0x20] sm:$0xf]
        %v274 = vld [vmem:[%s1 + $0x24] sm:$0xf]
        %v275 = vld [vmem:[%s1 + $0x28] sm:$0xf]
        %v276 = vld [vmem:[%s1 + $0x2c] sm:$0xf]
        %v277 = vld [vmem:[%s1 + $0x30] sm:$0xf]
        %v278 = vld [vmem:[%s1 + $0x34] sm:$0xf]
        %v279 = vld [vmem:[%s1 + $0x38] sm:$0xf]
        %v280 = vld [vmem:[%s1 + $0x3c] sm:$0xf]
        %v281 = vld [vmem:[%s2] sm:$0xf]
        %v282 = vld [vmem:[%s2 + $0x4] sm:$0xf]
        %v283 = vld [vmem:[%s2 + $0x8] sm:$0xf]
        %v284 = vld [vmem:[%s2 + $0xc] sm:$0xf]
        %v285 = vld [vmem:[%s2 + $0x10] sm:$0xf]
        %v286 = vld [vmem:[%s2 + $0x14] sm:$0xf]
        %v287 = vld [vmem:[%s2 + $0x18] sm:$0xf]
        %v288 = vld [vmem:[%s2 + $0x1c] sm:$0xf]
        %v289 = vld [vmem:[%s2 + $0x20] sm:$0xf]
        %v290 = vld [vmem:[%s2 + $0x24] sm:$0xf]
        %v291 = vld [vmem:[%s2 + $0x28] sm:$0xf]
        %v292 = vld [vmem:[%s2 + $0x2c] sm:$0xf]
        %v293 = vld [vmem:[%s2 + $0x30] sm:$0xf]
        %v294 = vld [vmem:[%s2 + $0x34] sm:$0xf]
        %v295 = vld [vmem:[%s2 + $0x38] sm:$0xf]
        %v296 = vld [vmem:[%s2 + $0x3c] sm:$0xf]
        %v313 = vunpack.c.l.b16 %v265
        %v314 = vunpack.c.l.b16 %v266
        %v315 = vunpack.c.l.b16 %v267
        %v316 = vunpack.c.l.b16 %v268
        %v317 = vunpack.c.l.b16 %v269
        %v318 = vunpack.c.l.b16 %v270
        %v319 = vunpack.c.l.b16 %v271
        %v320 = vunpack.c.l.b16 %v272
        %v321 = vunpack.c.l.b16 %v273
        %v322 = vunpack.c.l.b16 %v274
        %v323 = vunpack.c.l.b16 %v275
        %v324 = vunpack.c.l.b16 %v276
        %v325 = vunpack.c.l.b16 %v277
        %v326 = vunpack.c.l.b16 %v278
        %v327 = vunpack.c.l.b16 %v279
        %v328 = vunpack.c.l.b16 %v280
        %v329 = vpack.c.b16 %v314, %v313
        %v330 = vpack.c.b16 %v316, %v315
        %v331 = vpack.c.b16 %v318, %v317
        %v332 = vpack.c.b16 %v320, %v319
        %v333 = vpack.c.b16 %v322, %v321
        %v334 = vpack.c.b16 %v324, %v323
        %v335 = vpack.c.b16 %v326, %v325
        %v336 = vpack.c.b16 %v328, %v327
        %v361 = vunpack.c.l.b16 %v281
        %v362 = vunpack.c.l.b16 %v282
        %v363 = vunpack.c.l.b16 %v283
        %v364 = vunpack.c.l.b16 %v284
        %v365 = vunpack.c.l.b16 %v285
        %v366 = vunpack.c.l.b16 %v286
        %v367 = vunpack.c.l.b16 %v287
        %v368 = vunpack.c.l.b16 %v288
        %v369 = vunpack.c.l.b16 %v289
        %v370 = vunpack.c.l.b16 %v290
        %v371 = vunpack.c.l.b16 %v291
        %v372 = vunpack.c.l.b16 %v292
        %v373 = vunpack.c.l.b16 %v293
        %v374 = vunpack.c.l.b16 %v294
        %v375 = vunpack.c.l.b16 %v295
        %v376 = vunpack.c.l.b16 %v296
        %v377 = vpack.c.b16 %v362, %v361
        %v378 = vpack.c.b16 %v364, %v363
        %v379 = vpack.c.b16 %v366, %v365
        %v380 = vpack.c.b16 %v368, %v367
        %v381 = vpack.c.b16 %v370, %v369
        %v382 = vpack.c.b16 %v372, %v371
        %v383 = vpack.c.b16 %v374, %v373
        %v384 = vpack.c.b16 %v376, %v375
        %393 = vmatprep.subr.bf16.mxu0 0
        %394 = vmatpush1.bf16.msra.mxu0 %v377
        %395 = vmatprep.subr.bf16.mxu0 0
        %396 = vmatpush1.bf16.msra.mxu0 %v378
        %397 = vmatprep.subr.bf16.mxu0 0
        %398 = vmatpush1.bf16.msra.mxu0 %v379
        %399 = vmatprep.subr.bf16.mxu0 0
        %400 = vmatpush1.bf16.msra.mxu0 %v380
        %401 = vmatprep.subr.bf16.mxu0 0
        %402 = vmatpush1.bf16.msra.mxu0 %v381
        %403 = vmatprep.subr.bf16.mxu0 0
        %404 = vmatpush1.bf16.msra.mxu0 %v382
        %405 = vmatprep.subr.bf16.mxu0 0
        %406 = vmatpush1.bf16.msra.mxu0 %v383
        %407 = vmatprep.subr.bf16.mxu0 0
        %408 = vmatpush1.bf16.msra.mxu0 %v384
        %409 = vmatprep.subr.bf16.mxu0 0
        %410 = vmatpush1.bf16.msra.mxu0 0
        %411 = vmatprep.subr.bf16.mxu0 0
        %412 = vmatpush1.bf16.msra.mxu0 0
        %413 = vmatprep.subr.bf16.mxu0 0
        %414 = vmatpush1.bf16.msra.mxu0 0
        %415 = vmatprep.subr.bf16.mxu0 0
        %416 = vmatpush1.bf16.msra.mxu0 0
        %417 = vmatprep.subr.bf16.mxu0 0
        %418 = vmatpush1.bf16.msra.mxu0 0
        %419 = vmatprep.subr.bf16.mxu0 0
        %420 = vmatpush1.bf16.msra.mxu0 0
        %421 = vmatprep.subr.bf16.mxu0 0
        %422 = vmatpush1.bf16.msra.mxu0 0
        %423 = vmatprep.subr.bf16.mxu0 0
        %424 = vmatpush1.bf16.msra.mxu0 0
        %425 = vmatprep.mubr.bf16.mxu0 0
        %426 = vmatmul.mubr.bf16.gmra.mrb[0].mxu0 %v329
        %v427 = vpop.f32.mrb[0].mxu0
        %v428 = vadd.f32 0.0, %v427
        %v429 = vpop.f32.mrb[0].mxu0
        %v430 = vpop.f32.mrb[0].mxu0
        %v431 = vadd.f32 0.0, %v430
        %v432 = vpop.f32.mrb[0].mxu0
        %433 = vmatprep.mubr.bf16.mxu0 0
        %434 = vmatmul.mubr.bf16.gmra.mrb[0].mxu0 %v330
        %v435 = vpop.f32.mrb[0].mxu0
        %v436 = vadd.f32 0.0, %v435
        %v437 = vpop.f32.mrb[0].mxu0
        %v438 = vpop.f32.mrb[0].mxu0
        %v439 = vadd.f32 0.0, %v438
        %v440 = vpop.f32.mrb[0].mxu0
        %441 = vmatprep.mubr.bf16.mxu0 0
        %442 = vmatmul.mubr.bf16.gmra.mrb[0].mxu0 %v331
        %v443 = vpop.f32.mrb[0].mxu0
        %v444 = vadd.f32 0.0, %v443
        %v445 = vpop.f32.mrb[0].mxu0
        %v446 = vpop.f32.mrb[0].mxu0
        %v447 = vadd.f32 0.0, %v446
        %v448 = vpop.f32.mrb[0].mxu0
        %449 = vmatprep.mubr.bf16.mxu0 0
        %450 = vmatmul.mubr.bf16.gmra.mrb[0].mxu0 %v332
        %v451 = vpop.f32.mrb[0].mxu0
        %v452 = vadd.f32 0.0, %v451
        %v453 = vpop.f32.mrb[0].mxu0
        %v454 = vpop.f32.mrb[0].mxu0
        %v455 = vadd.f32 0.0, %v454
        %v456 = vpop.f32.mrb[0].mxu0
        %457 = vmatprep.mubr.bf16.mxu0 0
        %458 = vmatmul.mubr.bf16.gmra.mrb[0].mxu0 %v333
        %v459 = vpop.f32.mrb[0].mxu0
        %v460 = vadd.f32 0.0, %v459
        %v461 = vpop.f32.mrb[0].mxu0
        %v462 = vpop.f32.mrb[0].mxu0
        %v463 = vadd.f32 0.0, %v462
        %v464 = vpop.f32.mrb[0].mxu0
        %465 = vmatprep.mubr.bf16.mxu0 0
        %466 = vmatmul.mubr.bf16.gmra.mrb[0].mxu0 %v334
        %v467 = vpop.f32.mrb[0].mxu0
        %v468 = vadd.f32 0.0, %v467
        %v469 = vpop.f32.mrb[0].mxu0
        %v470 = vpop.f32.mrb[0].mxu0
        %v471 = vadd.f32 0.0, %v470
        %v472 = vpop.f32.mrb[0].mxu0
        %473 = vmatprep.mubr.bf16.mxu0 0
        %474 = vmatmul.mubr.bf16.gmra.mrb[0].mxu0 %v335
        %v475 = vpop.f32.mrb[0].mxu0
        %v476 = vadd.f32 0.0, %v475
        %v477 = vpop.f32.mrb[0].mxu0
        %v478 = vpop.f32.mrb[0].mxu0
        %v479 = vadd.f32 0.0, %v478
        %v480 = vpop.f32.mrb[0].mxu0
        %481 = vmatprep.mubr.bf16.mxu0 0
        %482 = vmatmul.mubr.bf16.gmra.mrb[0].mxu0 %v336
        %v483 = vpop.f32.mrb[0].mxu0
        %v484 = vadd.f32 0.0, %v483
        %v485 = vpop.f32.mrb[0].mxu0
        %v486 = vpop.f32.mrb[0].mxu0
        %v487 = vadd.f32 0.0, %v486
        %v488 = vpop.f32.mrb[0].mxu0
        %489 = vdwg.mxu0
        %v490 = vpack.c.bf16 %v431, %v428
        %v491 = vpack.c.bf16 %v439, %v436
        %v492 = vpack.c.bf16 %v447, %v444
        %v493 = vpack.c.bf16 %v455, %v452
        %v494 = vpack.c.bf16 %v463, %v460
        %v495 = vpack.c.bf16 %v471, %v468
        %v496 = vpack.c.bf16 %v479, %v476
        %v497 = vpack.c.bf16 %v487, %v484
        %498 = vst [vmem:[#allocation3] sm:$0xff] %v490
        %499 = vst [vmem:[#allocation3 + $0x8] sm:$0xff] %v491
        %500 = vst [vmem:[#allocation3 + $0x10] sm:$0xff] %v492
        %501 = vst [vmem:[#allocation3 + $0x18] sm:$0xff] %v493
        %502 = vst [vmem:[#allocation3 + $0x20] sm:$0xff] %v494
        %503 = vst [vmem:[#allocation3 + $0x28] sm:$0xff] %v495
        %504 = vst [vmem:[#allocation3 + $0x30] sm:$0xff] %v496
        %505 = vst [vmem:[#allocation3 + $0x38] sm:$0xff] %v497
      $region44: #{mpnn_forward.1} parent=39 // pred_fallthru
        _
      %p506 = scmp.gt.s32.totalorder %s20, 0
      %p507 = pnand %p259, %p506
      %p508 = pneg %p507
      // Predicated region
      $region45: #{mpnn_forward.1} parent=39 // pred_check
        _
      $region46: #{mpnn_forward.1} parent=39 // pred_check_branch
        %510 = sbr.rel (%p507) target = $region48
      $region47: #{mpnn_forward.1} parent=39 // pred_region
        %s511 = sadd.s32 %s20, 1
        %p512 = scmp.lt.s32.totalorder %s511, 0
        %s513 = ssub.s32 0, %s511
        %s514 = scalar_select %p512, %s513, %s511
        %s515 = sand.u32 %s514, 1
        %s516 = ssub.s32 0, %s515
        %s517 = scalar_select %p512, %s516, %s515
        %p518 = scmp.ne.s32.totalorder %s517, 0
        %p519 = scmp.lt.s32.totalorder %s517, 0
        %p520 = pnand %p519, %p518
        %p521 = pneg %p520
        %s522 = sadd.s32 %s517, 2
        %s523 = scalar_select %p521, %s522, %s517
        %s524 = smul.u32 %s523, 8
        %s525 = smul.addr %s524, 8
        %s526 = scalar_lea.vmem [#allocation2], %s525
        %v527 = vld [vmem:[%s526] sm:$0xff]
        %v528 = vld [vmem:[%s526 + $0x8] sm:$0xff]
        %v529 = vld [vmem:[%s526 + $0x10] sm:$0xff]
        %v530 = vld [vmem:[%s526 + $0x18] sm:$0xff]
        %v531 = vld [vmem:[%s526 + $0x20] sm:$0xff]
        %v532 = vld [vmem:[%s526 + $0x28] sm:$0xff]
        %v533 = vld [vmem:[%s526 + $0x30] sm:$0xff]
        %v534 = vld [vmem:[%s526 + $0x38] sm:$0xff]
        %v535 = vld [vmem:[%s250] sm:$0xf]
        %v536 = vld [vmem:[%s250 + $0x4] sm:$0xf]
        %v537 = vld [vmem:[%s250 + $0x8] sm:$0xf]
        %v538 = vld [vmem:[%s250 + $0xc] sm:$0xf]
        %v539 = vld [vmem:[%s250 + $0x10] sm:$0xf]
        %v540 = vld [vmem:[%s250 + $0x14] sm:$0xf]
        %v541 = vld [vmem:[%s250 + $0x18] sm:$0xf]
        %v542 = vld [vmem:[%s250 + $0x1c] sm:$0xf]
        %v543 = vld [vmem:[%s250 + $0x20] sm:$0xf]
        %v544 = vld [vmem:[%s250 + $0x24] sm:$0xf]
        %v545 = vld [vmem:[%s250 + $0x28] sm:$0xf]
        %v546 = vld [vmem:[%s250 + $0x2c] sm:$0xf]
        %v547 = vld [vmem:[%s250 + $0x30] sm:$0xf]
        %v548 = vld [vmem:[%s250 + $0x34] sm:$0xf]
        %v549 = vld [vmem:[%s250 + $0x38] sm:$0xf]
        %v550 = vld [vmem:[%s250 + $0x3c] sm:$0xf]
        %v567 = vunpack.c.l.b16 %v535
        %v568 = vunpack.c.l.b16 %v536
        %v569 = vunpack.c.l.b16 %v537
        %v570 = vunpack.c.l.b16 %v538
        %v571 = vunpack.c.l.b16 %v539
        %v572 = vunpack.c.l.b16 %v540
        %v573 = vunpack.c.l.b16 %v541
        %v574 = vunpack.c.l.b16 %v542
        %v575 = vunpack.c.l.b16 %v543
        %v576 = vunpack.c.l.b16 %v544
        %v577 = vunpack.c.l.b16 %v545
        %v578 = vunpack.c.l.b16 %v546
        %v579 = vunpack.c.l.b16 %v547
        %v580 = vunpack.c.l.b16 %v548
        %v581 = vunpack.c.l.b16 %v549
        %v582 = vunpack.c.l.b16 %v550
        %v583 = vpack.c.b16 %v568, %v567
        %v584 = vpack.c.b16 %v570, %v569
        %v585 = vpack.c.b16 %v572, %v571
        %v586 = vpack.c.b16 %v574, %v573
        %v587 = vpack.c.b16 %v576, %v575
        %v588 = vpack.c.b16 %v578, %v577
        %v589 = vpack.c.b16 %v580, %v579
        %v590 = vpack.c.b16 %v582, %v581
        %599 = vmatprep.subr.bf16.mxu0 0
        %600 = vmatpush1.bf16.msra.mxu0 %v583
        %601 = vmatprep.subr.bf16.mxu0 0
        %602 = vmatpush1.bf16.msra.mxu0 %v584
        %603 = vmatprep.subr.bf16.mxu0 0
        %604 = vmatpush1.bf16.msra.mxu0 %v585
        %605 = vmatprep.subr.bf16.mxu0 0
        %606 = vmatpush1.bf16.msra.mxu0 %v586
        %607 = vmatprep.subr.bf16.mxu0 0
        %608 = vmatpush1.bf16.msra.mxu0 %v587
        %609 = vmatprep.subr.bf16.mxu0 0
        %610 = vmatpush1.bf16.msra.mxu0 %v588
        %611 = vmatprep.subr.bf16.mxu0 0
        %612 = vmatpush1.bf16.msra.mxu0 %v589
        %613 = vmatprep.subr.bf16.mxu0 0
        %614 = vmatpush1.bf16.msra.mxu0 %v590
        %615 = vmatprep.subr.bf16.mxu0 0
        %616 = vmatpush1.bf16.msra.mxu0 0
        %617 = vmatprep.subr.bf16.mxu0 0
        %618 = vmatpush1.bf16.msra.mxu0 0
        %619 = vmatprep.subr.bf16.mxu0 0
        %620 = vmatpush1.bf16.msra.mxu0 0
        %621 = vmatprep.subr.bf16.mxu0 0
        %622 = vmatpush1.bf16.msra.mxu0 0
        %623 = vmatprep.subr.bf16.mxu0 0
        %624 = vmatpush1.bf16.msra.mxu0 0
        %625 = vmatprep.subr.bf16.mxu0 0
        %626 = vmatpush1.bf16.msra.mxu0 0
        %627 = vmatprep.subr.bf16.mxu0 0
        %628 = vmatpush1.bf16.msra.mxu0 0
        %629 = vmatprep.subr.bf16.mxu0 0
        %630 = vmatpush1.bf16.msra.mxu0 0
        %631 = vmatprep.mubr.bf16.mxu0 0
        %632 = vmatmul.mubr.bf16.gmra.mrb[0].mxu0 %v527
        %v633 = vpop.f32.mrb[0].mxu0
        %v634 = vadd.f32 0.0, %v633
        %v635 = vpop.f32.mrb[0].mxu0
        %v636 = vpop.f32.mrb[0].mxu0
        %v637 = vadd.f32 0.0, %v636
        %v638 = vpop.f32.mrb[0].mxu0
        %639 = vmatprep.mubr.bf16.mxu0 0
        %640 = vmatmul.mubr.bf16.gmra.mrb[0].mxu0 %v528
        %v641 = vpop.f32.mrb[0].mxu0
        %v642 = vadd.f32 0.0, %v641
        %v643 = vpop.f32.mrb[0].mxu0
        %v644 = vpop.f32.mrb[0].mxu0
        %v645 = vadd.f32 0.0, %v644
        %v646 = vpop.f32.mrb[0].mxu0
        %647 = vmatprep.mubr.bf16.mxu0 0
        %648 = vmatmul.mubr.bf16.gmra.mrb[0].mxu0 %v529
        %v649 = vpop.f32.mrb[0].mxu0
        %v650 = vadd.f32 0.0, %v649
        %v651 = vpop.f32.mrb[0].mxu0
        %v652 = vpop.f32.mrb[0].mxu0
        %v653 = vadd.f32 0.0, %v652
        %v654 = vpop.f32.mrb[0].mxu0
        %655 = vmatprep.mubr.bf16.mxu0 0
        %656 = vmatmul.mubr.bf16.gmra.mrb[0].mxu0 %v530
        %v657 = vpop.f32.mrb[0].mxu0
        %v658 = vadd.f32 0.0, %v657
        %v659 = vpop.f32.mrb[0].mxu0
        %v660 = vpop.f32.mrb[0].mxu0
        %v661 = vadd.f32 0.0, %v660
        %v662 = vpop.f32.mrb[0].mxu0
        %663 = vmatprep.mubr.bf16.mxu0 0
        %664 = vmatmul.mubr.bf16.gmra.mrb[0].mxu0 %v531
        %v665 = vpop.f32.mrb[0].mxu0
        %v666 = vadd.f32 0.0, %v665
        %v667 = vpop.f32.mrb[0].mxu0
        %v668 = vpop.f32.mrb[0].mxu0
        %v669 = vadd.f32 0.0, %v668
        %v670 = vpop.f32.mrb[0].mxu0
        %671 = vmatprep.mubr.bf16.mxu0 0
        %672 = vmatmul.mubr.bf16.gmra.mrb[0].mxu0 %v532
        %v673 = vpop.f32.mrb[0].mxu0
        %v674 = vadd.f32 0.0, %v673
        %v675 = vpop.f32.mrb[0].mxu0
        %v676 = vpop.f32.mrb[0].mxu0
        %v677 = vadd.f32 0.0, %v676
        %v678 = vpop.f32.mrb[0].mxu0
        %679 = vmatprep.mubr.bf16.mxu0 0
        %680 = vmatmul.mubr.bf16.gmra.mrb[0].mxu0 %v533
        %v681 = vpop.f32.mrb[0].mxu0
        %v682 = vadd.f32 0.0, %v681
        %v683 = vpop.f32.mrb[0].mxu0
        %v684 = vpop.f32.mrb[0].mxu0
        %v685 = vadd.f32 0.0, %v684
        %v686 = vpop.f32.mrb[0].mxu0
        %687 = vmatprep.mubr.bf16.mxu0 0
        %688 = vmatmul.mubr.bf16.gmra.mrb[0].mxu0 %v534
        %v689 = vpop.f32.mrb[0].mxu0
        %v690 = vadd.f32 0.0, %v689
        %v691 = vpop.f32.mrb[0].mxu0
        %v692 = vpop.f32.mrb[0].mxu0
        %v693 = vadd.f32 0.0, %v692
        %v694 = vpop.f32.mrb[0].mxu0
        %695 = vdwg.mxu0
        %v696 = vpack.c.bf16 %v637, %v634
        %v697 = vpack.c.bf16 %v645, %v642
        %v698 = vpack.c.bf16 %v653, %v650
        %v699 = vpack.c.bf16 %v661, %v658
        %v700 = vpack.c.bf16 %v669, %v666
        %v701 = vpack.c.bf16 %v677, %v674
        %v702 = vpack.c.bf16 %v685, %v682
        %v703 = vpack.c.bf16 %v693, %v690
        %704 = vst [vmem:[#allocation3] sm:$0xff] %v696
        %705 = vst [vmem:[#allocation3 + $0x8] sm:$0xff] %v697
        %706 = vst [vmem:[#allocation3 + $0x10] sm:$0xff] %v698
        %707 = vst [vmem:[#allocation3 + $0x18] sm:$0xff] %v699
        %708 = vst [vmem:[#allocation3 + $0x20] sm:$0xff] %v700
        %709 = vst [vmem:[#allocation3 + $0x28] sm:$0xff] %v701
        %710 = vst [vmem:[#allocation3 + $0x30] sm:$0xff] %v702
        %711 = vst [vmem:[#allocation3 + $0x38] sm:$0xff] %v703
      $region48: #{mpnn_forward.1} parent=39 // pred_fallthru
        _
      %s712 = sshra.s32 %s258, 3
      %s713 = sand.u32 %s258, 7
      %s714 = smul.addr %s712, 4
      %s715 = scalar_lea.vmem %s0, %s714
      %v716 = vld [vmem:[%s715] sm:$0xf]
      %v717 = vld [vmem:[%s715 + $0x4] sm:$0xf]
      %v718 = vld [vmem:[%s715 + $0x8] sm:$0xf]
      %v719 = vld [vmem:[%s715 + $0xc] sm:$0xf]
      %v720 = vld [vmem:[%s715 + $0x10] sm:$0xf]
      %v721 = vld [vmem:[%s715 + $0x14] sm:$0xf]
      %v722 = vld [vmem:[%s715 + $0x18] sm:$0xf]
      %v723 = vld [vmem:[%s715 + $0x1c] sm:$0xf]
      %v724 = vld [vmem:[%s715 + $0x20] sm:$0xf]
      %v725 = vld [vmem:[%s715 + $0x24] sm:$0xf]
      %v726 = vld [vmem:[%s715 + $0x28] sm:$0xf]
      %v727 = vld [vmem:[%s715 + $0x2c] sm:$0xf]
      %v728 = vld [vmem:[%s715 + $0x30] sm:$0xf]
      %v729 = vld [vmem:[%s715 + $0x34] sm:$0xf]
      %v730 = vld [vmem:[%s715 + $0x38] sm:$0xf]
      %v731 = vld [vmem:[%s715 + $0x3c] sm:$0xf]
      %v732 = vld [vmem:[#allocation3] sm:$0xff]
      %v733 = vld [vmem:[#allocation3 + $0x8] sm:$0xff]
      %v734 = vld [vmem:[#allocation3 + $0x10] sm:$0xff]
      %v735 = vld [vmem:[#allocation3 + $0x18] sm:$0xff]
      %v736 = vld [vmem:[#allocation3 + $0x20] sm:$0xff]
      %v737 = vld [vmem:[#allocation3 + $0x28] sm:$0xff]
      %v738 = vld [vmem:[#allocation3 + $0x30] sm:$0xff]
      %v739 = vld [vmem:[#allocation3 + $0x38] sm:$0xff]
      %v740 = vld [vmem:[%s256] sm:$0x1]
      %v742 = vlaneseq
      %v743 = vshrl.u32 %v742, 7
      %v744 = vsub.s32 0, %v743
      %v745 = vrot.slane %v740, %v744
      %v763 = vunpack.c.l.b16 %v716
      %v764 = vunpack.c.l.b16 %v717
      %v765 = vunpack.c.l.b16 %v718
      %v766 = vunpack.c.l.b16 %v719
      %v767 = vunpack.c.l.b16 %v720
      %v768 = vunpack.c.l.b16 %v721
      %v769 = vunpack.c.l.b16 %v722
      %v770 = vunpack.c.l.b16 %v723
      %v771 = vunpack.c.l.b16 %v724
      %v772 = vunpack.c.l.b16 %v725
      %v773 = vunpack.c.l.b16 %v726
      %v774 = vunpack.c.l.b16 %v727
      %v775 = vunpack.c.l.b16 %v728
      %v776 = vunpack.c.l.b16 %v729
      %v777 = vunpack.c.l.b16 %v730
      %v778 = vunpack.c.l.b16 %v731
      %v779 = vpack.c.b16 %v764, %v763
      %v780 = vpack.c.b16 %v766, %v765
      %v781 = vpack.c.b16 %v768, %v767
      %v782 = vpack.c.b16 %v770, %v769
      %v783 = vpack.c.b16 %v772, %v771
      %v784 = vpack.c.b16 %v774, %v773
      %v785 = vpack.c.b16 %v776, %v775
      %v786 = vpack.c.b16 %v778, %v777
      %795 = vmatprep.subr.bf16.mxu0 0
      %796 = vmatpush1.bf16.msra.mxu0 %v732
      %797 = vmatprep.subr.bf16.mxu0 0
      %798 = vmatpush1.bf16.msra.mxu0 %v733
      %799 = vmatprep.subr.bf16.mxu0 0
      %800 = vmatpush1.bf16.msra.mxu0 %v734
      %801 = vmatprep.subr.bf16.mxu0 0
      %802 = vmatpush1.bf16.msra.mxu0 %v735
      %803 = vmatprep.subr.bf16.mxu0 0
      %804 = vmatpush1.bf16.msra.mxu0 %v736
      %805 = vmatprep.subr.bf16.mxu0 0
      %806 = vmatpush1.bf16.msra.mxu0 %v737
      %807 = vmatprep.subr.bf16.mxu0 0
      %808 = vmatpush1.bf16.msra.mxu0 %v738
      %809 = vmatprep.subr.bf16.mxu0 0
      %810 = vmatpush1.bf16.msra.mxu0 %v739
      %811 = vmatprep.subr.bf16.mxu0 0
      %812 = vmatpush1.bf16.msra.mxu0 0
      %813 = vmatprep.subr.bf16.mxu0 0
      %814 = vmatpush1.bf16.msra.mxu0 0
      %815 = vmatprep.subr.bf16.mxu0 0
      %816 = vmatpush1.bf16.msra.mxu0 0
      %817 = vmatprep.subr.bf16.mxu0 0
      %818 = vmatpush1.bf16.msra.mxu0 0
      %819 = vmatprep.subr.bf16.mxu0 0
      %820 = vmatpush1.bf16.msra.mxu0 0
      %821 = vmatprep.subr.bf16.mxu0 0
      %822 = vmatpush1.bf16.msra.mxu0 0
      %823 = vmatprep.subr.bf16.mxu0 0
      %824 = vmatpush1.bf16.msra.mxu0 0
      %825 = vmatprep.subr.bf16.mxu0 0
      %826 = vmatpush1.bf16.msra.mxu0 0
      %827 = vmatprep.mubr.bf16.mxu0 0
      %828 = vmatmul.mubr.bf16.gmra.mrb[0].mxu0 %v779
      %v829 = vpop.f32.mrb[0].mxu0
      %v830 = vadd.f32 %v745, %v829
      %v831 = vpop.f32.mrb[0].mxu0
      %v832 = vpop.f32.mrb[0].mxu0
      %v833 = vadd.f32 %v745, %v832
      %v834 = vpop.f32.mrb[0].mxu0
      %835 = vmatprep.mubr.bf16.mxu0 0
      %836 = vmatmul.mubr.bf16.gmra.mrb[0].mxu0 %v780
      %v837 = vpop.f32.mrb[0].mxu0
      %v838 = vadd.f32 %v745, %v837
      %v839 = vpop.f32.mrb[0].mxu0
      %v840 = vpop.f32.mrb[0].mxu0
      %v841 = vadd.f32 %v745, %v840
      %v842 = vpop.f32.mrb[0].mxu0
      %843 = vmatprep.mubr.bf16.mxu0 0
      %844 = vmatmul.mubr.bf16.gmra.mrb[0].mxu0 %v781
      %v845 = vpop.f32.mrb[0].mxu0
      %v846 = vadd.f32 %v745, %v845
      %v847 = vpop.f32.mrb[0].mxu0
      %v848 = vpop.f32.mrb[0].mxu0
      %v849 = vadd.f32 %v745, %v848
      %v850 = vpop.f32.mrb[0].mxu0
      %851 = vmatprep.mubr.bf16.mxu0 0
      %852 = vmatmul.mubr.bf16.gmra.mrb[0].mxu0 %v782
      %v853 = vpop.f32.mrb[0].mxu0
      %v854 = vadd.f32 %v745, %v853
      %v855 = vpop.f32.mrb[0].mxu0
      %v856 = vpop.f32.mrb[0].mxu0
      %v857 = vadd.f32 %v745, %v856
      %v858 = vpop.f32.mrb[0].mxu0
      %859 = vmatprep.mubr.bf16.mxu0 0
      %860 = vmatmul.mubr.bf16.gmra.mrb[0].mxu0 %v783
      %v861 = vpop.f32.mrb[0].mxu0
      %v862 = vadd.f32 %v745, %v861
      %v863 = vpop.f32.mrb[0].mxu0
      %v864 = vpop.f32.mrb[0].mxu0
      %v865 = vadd.f32 %v745, %v864
      %v866 = vpop.f32.mrb[0].mxu0
      %867 = vmatprep.mubr.bf16.mxu0 0
      %868 = vmatmul.mubr.bf16.gmra.mrb[0].mxu0 %v784
      %v869 = vpop.f32.mrb[0].mxu0
      %v870 = vadd.f32 %v745, %v869
      %v871 = vpop.f32.mrb[0].mxu0
      %v872 = vpop.f32.mrb[0].mxu0
      %v873 = vadd.f32 %v745, %v872
      %v874 = vpop.f32.mrb[0].mxu0
      %875 = vmatprep.mubr.bf16.mxu0 0
      %876 = vmatmul.mubr.bf16.gmra.mrb[0].mxu0 %v785
      %v877 = vpop.f32.mrb[0].mxu0
      %v878 = vadd.f32 %v745, %v877
      %v879 = vpop.f32.mrb[0].mxu0
      %v880 = vpop.f32.mrb[0].mxu0
      %v881 = vadd.f32 %v745, %v880
      %v882 = vpop.f32.mrb[0].mxu0
      %883 = vmatprep.mubr.bf16.mxu0 0
      %884 = vmatmul.mubr.bf16.gmra.mrb[0].mxu0 %v786
      %v885 = vpop.f32.mrb[0].mxu0
      %v886 = vadd.f32 %v745, %v885
      %v887 = vpop.f32.mrb[0].mxu0
      %v888 = vpop.f32.mrb[0].mxu0
      %v889 = vadd.f32 %v745, %v888
      %v890 = vpop.f32.mrb[0].mxu0
      %891 = vdwg.mxu0
      %p892 = scmp.lt.s32.totalorder %s20, 2
      // Predicated region
      $region49: #{mpnn_forward.1} parent=39 // pred_check
        %p893 = pneg %p892
      $region50: #{mpnn_forward.1} parent=39 // pred_check_branch
        %895 = sbr.rel (%p893) target = $region52
      $region51: #{mpnn_forward.1} parent=39 // pred_region
        %v896 = vmax.f32 %v830, 0.0
        %v897 = vmax.f32 %v833, 0.0
        %v898 = vmax.f32 %v838, 0.0
        %v899 = vmax.f32 %v841, 0.0
        %v900 = vmax.f32 %v846, 0.0
        %v901 = vmax.f32 %v849, 0.0
        %v902 = vmax.f32 %v854, 0.0
        %v903 = vmax.f32 %v857, 0.0
        %v904 = vmax.f32 %v862, 0.0
        %v905 = vmax.f32 %v865, 0.0
        %v906 = vmax.f32 %v870, 0.0
        %v907 = vmax.f32 %v873, 0.0
        %v908 = vmax.f32 %v878, 0.0
        %v909 = vmax.f32 %v881, 0.0
        %v910 = vmax.f32 %v886, 0.0
        %v911 = vmax.f32 %v889, 0.0
        %v912 = vpack.c.bf16 %v897, %v896
        %v913 = vpack.c.bf16 %v899, %v898
        %v914 = vpack.c.bf16 %v901, %v900
        %v915 = vpack.c.bf16 %v903, %v902
        %v916 = vpack.c.bf16 %v905, %v904
        %v917 = vpack.c.bf16 %v907, %v906
        %v918 = vpack.c.bf16 %v909, %v908
        %v919 = vpack.c.bf16 %v911, %v910
        %p920 = scmp.lt.s32.totalorder %s20, 0
        %s921 = ssub.s32 0, %s20
        %s922 = scalar_select %p920, %s921, %s20
        %s923 = sand.u32 %s922, 1
        %s924 = ssub.s32 0, %s923
        %s925 = scalar_select %p920, %s924, %s923
        %p926 = scmp.ne.s32.totalorder %s925, 0
        %p927 = scmp.lt.s32.totalorder %s925, 0
        %p928 = pnand %p927, %p926
        %p929 = pneg %p928
        %s930 = sadd.s32 %s925, 2
        %s931 = scalar_select %p929, %s930, %s925
        %s932 = sshra.s32 %s258, 4
        %s933 = sand.u32 %s258, 15
        %s934 = smul.u32 %s931, 8
        %s935 = sadd.s32 %s932, %s934
        %s936 = smul.addr %s935, 8
        %s937 = scalar_lea.vmem [#allocation2], %s936
        %938 = vst [vmem:[%s937] sm:$0xff] %v912
        %939 = vst [vmem:[%s937 + $0x8] sm:$0xff] %v913
        %940 = vst [vmem:[%s937 + $0x10] sm:$0xff] %v914
        %941 = vst [vmem:[%s937 + $0x18] sm:$0xff] %v915
        %942 = vst [vmem:[%s937 + $0x20] sm:$0xff] %v916
        %943 = vst [vmem:[%s937 + $0x28] sm:$0xff] %v917
        %944 = vst [vmem:[%s937 + $0x30] sm:$0xff] %v918
        %945 = vst [vmem:[%s937 + $0x38] sm:$0xff] %v919
      $region52: #{mpnn_forward.1} parent=39 // pred_fallthru
        _
      %p946 = scmp.eq.s32.totalorder %s20, 2
      // Predicated region
      $region53: #{mpnn_forward.1} parent=39 // pred_check
        %p947 = pneg %p946
      $region54: #{mpnn_forward.1} parent=39 // pred_check_branch
        %949 = sbr.rel (%p947) target = $region56
      $region55: #{mpnn_forward.1} parent=39 // pred_region
        %v950 = vlaneseq
        %v951 = vand.u32 %v950, 127
        %vm952 = vcmp.lt.s32.totalorder %v951, 4
        %v953 = vsel %vm952, %v830, -inf
        %v954 = vsel %vm952, %v833, -inf
        %v955 = vsel %vm952, %v838, -inf
        %v956 = vsel %vm952, %v841, -inf
        %v957 = vsel %vm952, %v846, -inf
        %v958 = vsel %vm952, %v849, -inf
        %v959 = vsel %vm952, %v854, -inf
        %v960 = vsel %vm952, %v857, -inf
        %v961 = vsel %vm952, %v862, -inf
        %v962 = vsel %vm952, %v865, -inf
        %v963 = vsel %vm952, %v870, -inf
        %v964 = vsel %vm952, %v873, -inf
        %v965 = vsel %vm952, %v878, -inf
        %v966 = vsel %vm952, %v881, -inf
        %v967 = vsel %vm952, %v886, -inf
        %v968 = vsel %vm952, %v889, -inf
        %969 = vmax.xlane.f32.xlu0 %v953
        %v970 = vpop.xlane.xlu0 %969
        %971 = vmax.xlane.f32.xlu0 %v954
        %v972 = vpop.xlane.xlu0 %971
        %973 = vmax.xlane.f32.xlu0 %v955
        %v974 = vpop.xlane.xlu0 %973
        %975 = vmax.xlane.f32.xlu0 %v956
        %v976 = vpop.xlane.xlu0 %975
        %977 = vmax.xlane.f32.xlu0 %v957
        %v978 = vpop.xlane.xlu0 %977
        %979 = vmax.xlane.f32.xlu0 %v958
        %v980 = vpop.xlane.xlu0 %979
        %981 = vmax.xlane.f32.xlu0 %v959
        %v982 = vpop.xlane.xlu0 %981
        %983 = vmax.xlane.f32.xlu0 %v960
        %v984 = vpop.xlane.xlu0 %983
        %985 = vmax.xlane.f32.xlu0 %v961
        %v986 = vpop.xlane.xlu0 %985
        %987 = vmax.xlane.f32.xlu0 %v962
        %v988 = vpop.xlane.xlu0 %987
        %989 = vmax.xlane.f32.xlu0 %v963
        %v990 = vpop.xlane.xlu0 %989
        %991 = vmax.xlane.f32.xlu0 %v964
        %v992 = vpop.xlane.xlu0 %991
        %993 = vmax.xlane.f32.xlu0 %v965
        %v994 = vpop.xlane.xlu0 %993
        %995 = vmax.xlane.f32.xlu0 %v966
        %v996 = vpop.xlane.xlu0 %995
        %997 = vmax.xlane.f32.xlu0 %v967
        %v998 = vpop.xlane.xlu0 %997
        %999 = vmax.xlane.f32.xlu0 %v968
        %v1000 = vpop.xlane.xlu0 %999
        %v1001 = vsub.f32 %v953, %v970
        %v1002 = vsub.f32 %v954, %v972
        %v1003 = vsub.f32 %v955, %v974
        %v1004 = vsub.f32 %v956, %v976
        %v1005 = vsub.f32 %v957, %v978
        %v1006 = vsub.f32 %v958, %v980
        %v1007 = vsub.f32 %v959, %v982
        %v1008 = vsub.f32 %v960, %v984
        %v1009 = vsub.f32 %v961, %v986
        %v1010 = vsub.f32 %v962, %v988
        %v1011 = vsub.f32 %v963, %v990
        %v1012 = vsub.f32 %v964, %v992
        %v1013 = vsub.f32 %v965, %v994
        %v1014 = vsub.f32 %v966, %v996
        %v1015 = vsub.f32 %v967, %v998
        %v1016 = vsub.f32 %v968, %v1000
        %v1017 = vmul.f32 %v1001, 1.442695
        %v1018 = vpow.pop %v1017
        %v1019 = vmul.f32 %v1002, 1.442695
        %v1020 = vpow.pop %v1019
        %v1021 = vmul.f32 %v1003, 1.442695
        %v1022 = vpow.pop %v1021
        %v1023 = vmul.f32 %v1004, 1.442695
        %v1024 = vpow.pop %v1023
        %v1025 = vmul.f32 %v1005, 1.442695
        %v1026 = vpow.pop %v1025
        %v1027 = vmul.f32 %v1006, 1.442695
        %v1028 = vpow.pop %v1027
        %v1029 = vmul.f32 %v1007, 1.442695
        %v1030 = vpow.pop %v1029
        %v1031 = vmul.f32 %v1008, 1.442695
        %v1032 = vpow.pop %v1031
        %v1033 = vmul.f32 %v1009, 1.442695
        %v1034 = vpow.pop %v1033
        %v1035 = vmul.f32 %v1010, 1.442695
        %v1036 = vpow.pop %v1035
        %v1037 = vmul.f32 %v1011, 1.442695
        %v1038 = vpow.pop %v1037
        %v1039 = vmul.f32 %v1012, 1.442695
        %v1040 = vpow.pop %v1039
        %v1041 = vmul.f32 %v1013, 1.442695
        %v1042 = vpow.pop %v1041
        %v1043 = vmul.f32 %v1014, 1.442695
        %v1044 = vpow.pop %v1043
        %v1045 = vmul.f32 %v1015, 1.442695
        %v1046 = vpow.pop %v1045
        %v1047 = vmul.f32 %v1016, 1.442695
        %v1048 = vpow.pop %v1047
        %1049 = vadd.xlane.f32.xlu0 %v1018
        %v1050 = vpop.xlane.xlu0 %1049
        %1051 = vadd.xlane.f32.xlu0 %v1020
        %v1052 = vpop.xlane.xlu0 %1051
        %1053 = vadd.xlane.f32.xlu0 %v1022
        %v1054 = vpop.xlane.xlu0 %1053
        %1055 = vadd.xlane.f32.xlu0 %v1024
        %v1056 = vpop.xlane.xlu0 %1055
        %1057 = vadd.xlane.f32.xlu0 %v1026
        %v1058 = vpop.xlane.xlu0 %1057
        %1059 = vadd.xlane.f32.xlu0 %v1028
        %v1060 = vpop.xlane.xlu0 %1059
        %1061 = vadd.xlane.f32.xlu0 %v1030
        %v1062 = vpop.xlane.xlu0 %1061
        %1063 = vadd.xlane.f32.xlu0 %v1032
        %v1064 = vpop.xlane.xlu0 %1063
        %1065 = vadd.xlane.f32.xlu0 %v1034
        %v1066 = vpop.xlane.xlu0 %1065
        %1067 = vadd.xlane.f32.xlu0 %v1036
        %v1068 = vpop.xlane.xlu0 %1067
        %1069 = vadd.xlane.f32.xlu0 %v1038
        %v1070 = vpop.xlane.xlu0 %1069
        %1071 = vadd.xlane.f32.xlu0 %v1040
        %v1072 = vpop.xlane.xlu0 %1071
        %1073 = vadd.xlane.f32.xlu0 %v1042
        %v1074 = vpop.xlane.xlu0 %1073
        %1075 = vadd.xlane.f32.xlu0 %v1044
        %v1076 = vpop.xlane.xlu0 %1075
        %1077 = vadd.xlane.f32.xlu0 %v1046
        %v1078 = vpop.xlane.xlu0 %1077
        %1079 = vadd.xlane.f32.xlu0 %v1048
        %v1080 = vpop.xlane.xlu0 %1079
        %v1081 = vlog2.pop %v1050
        %v1082 = vmul.f32 %v1081, 0.6931472
        %v1083 = vlog2.pop %v1052
        %v1084 = vmul.f32 %v1083, 0.6931472
        %v1085 = vlog2.pop %v1054
        %v1086 = vmul.f32 %v1085, 0.6931472
        %v1087 = vlog2.pop %v1056
        %v1088 = vmul.f32 %v1087, 0.6931472
        %v1089 = vlog2.pop %v1058
        %v1090 = vmul.f32 %v1089, 0.6931472
        %v1091 = vlog2.pop %v1060
        %v1092 = vmul.f32 %v1091, 0.6931472
        %v1093 = vlog2.pop %v1062
        %v1094 = vmul.f32 %v1093, 0.6931472
        %v1095 = vlog2.pop %v1064
        %v1096 = vmul.f32 %v1095, 0.6931472
        %v1097 = vlog2.pop %v1066
        %v1098 = vmul.f32 %v1097, 0.6931472
        %v1099 = vlog2.pop %v1068
        %v1100 = vmul.f32 %v1099, 0.6931472
        %v1101 = vlog2.pop %v1070
        %v1102 = vmul.f32 %v1101, 0.6931472
        %v1103 = vlog2.pop %v1072
        %v1104 = vmul.f32 %v1103, 0.6931472
        %v1105 = vlog2.pop %v1074
        %v1106 = vmul.f32 %v1105, 0.6931472
        %v1107 = vlog2.pop %v1076
        %v1108 = vmul.f32 %v1107, 0.6931472
        %v1109 = vlog2.pop %v1078
        %v1110 = vmul.f32 %v1109, 0.6931472
        %v1111 = vlog2.pop %v1080
        %v1112 = vmul.f32 %v1111, 0.6931472
        %v1113 = vsub.f32 %v830, %v970
        %v1114 = vsub.f32 %v833, %v972
        %v1115 = vsub.f32 %v838, %v974
        %v1116 = vsub.f32 %v841, %v976
        %v1117 = vsub.f32 %v846, %v978
        %v1118 = vsub.f32 %v849, %v980
        %v1119 = vsub.f32 %v854, %v982
        %v1120 = vsub.f32 %v857, %v984
        %v1121 = vsub.f32 %v862, %v986
        %v1122 = vsub.f32 %v865, %v988
        %v1123 = vsub.f32 %v870, %v990
        %v1124 = vsub.f32 %v873, %v992
        %v1125 = vsub.f32 %v878, %v994
        %v1126 = vsub.f32 %v881, %v996
        %v1127 = vsub.f32 %v886, %v998
        %v1128 = vsub.f32 %v889, %v1000
        %v1129 = vsub.f32 %v1113, %v1082
        %v1130 = vsub.f32 %v1114, %v1084
        %v1131 = vsub.f32 %v1115, %v1086
        %v1132 = vsub.f32 %v1116, %v1088
        %v1133 = vsub.f32 %v1117, %v1090
        %v1134 = vsub.f32 %v1118, %v1092
        %v1135 = vsub.f32 %v1119, %v1094
        %v1136 = vsub.f32 %v1120, %v1096
        %v1137 = vsub.f32 %v1121, %v1098
        %v1138 = vsub.f32 %v1122, %v1100
        %v1139 = vsub.f32 %v1123, %v1102
        %v1140 = vsub.f32 %v1124, %v1104
        %v1141 = vsub.f32 %v1125, %v1106
        %v1142 = vsub.f32 %v1126, %v1108
        %v1143 = vsub.f32 %v1127, %v1110
        %v1144 = vsub.f32 %v1128, %v1112
        %v1145 = vsel %vm952, %v1129, 0.0
        %v1146 = vsel %vm952, %v1130, 0.0
        %v1147 = vsel %vm952, %v1131, 0.0
        %v1148 = vsel %vm952, %v1132, 0.0
        %v1149 = vsel %vm952, %v1133, 0.0
        %v1150 = vsel %vm952, %v1134, 0.0
        %v1151 = vsel %vm952, %v1135, 0.0
        %v1152 = vsel %vm952, %v1136, 0.0
        %v1153 = vsel %vm952, %v1137, 0.0
        %v1154 = vsel %vm952, %v1138, 0.0
        %v1155 = vsel %vm952, %v1139, 0.0
        %v1156 = vsel %vm952, %v1140, 0.0
        %v1157 = vsel %vm952, %v1141, 0.0
        %v1158 = vsel %vm952, %v1142, 0.0
        %v1159 = vsel %vm952, %v1143, 0.0
        %v1160 = vsel %vm952, %v1144, 0.0
        %s1161 = scalar_lea.vmem %s5, %s258
        %1162 = vst [vmem:[%s1161] sm:$0xff] %v1145
        %1163 = vst [vmem:[%s1161 + $0x8] sm:$0xff] %v1146
        %1164 = vst [vmem:[%s1161 + $0x10] sm:$0xff] %v1147
        %1165 = vst [vmem:[%s1161 + $0x18] sm:$0xff] %v1148
        %1166 = vst [vmem:[%s1161 + $0x20] sm:$0xff] %v1149
        %1167 = vst [vmem:[%s1161 + $0x28] sm:$0xff] %v1150
        %1168 = vst [vmem:[%s1161 + $0x30] sm:$0xff] %v1151
        %1169 = vst [vmem:[%s1161 + $0x38] sm:$0xff] %v1152
        %1170 = vst [vmem:[%s1161 + $0x40] sm:$0xff] %v1153
        %1171 = vst [vmem:[%s1161 + $0x48] sm:$0xff] %v1154
        %1172 = vst [vmem:[%s1161 + $0x50] sm:$0xff] %v1155
        %1173 = vst [vmem:[%s1161 + $0x58] sm:$0xff] %v1156
        %1174 = vst [vmem:[%s1161 + $0x60] sm:$0xff] %v1157
        %1175 = vst [vmem:[%s1161 + $0x68] sm:$0xff] %v1158
        %1176 = vst [vmem:[%s1161 + $0x70] sm:$0xff] %v1159
        %1177 = vst [vmem:[%s1161 + $0x78] sm:$0xff] %v1160
      $region56: #{mpnn_forward.1} parent=39 // pred_fallthru
        _
      // Predicated region
      $region57: #{mpnn_forward.1} parent=39 // pred_check
        %p1178 = pneg %p162
      $region58: #{mpnn_forward.1} parent=39 // pred_check_branch
        %1180 = sbr.rel (%p1178) target = $region60
      $region59: #{mpnn_forward.1} parent=39 // pred_region
        _
      $region60: #{mpnn_forward.1} parent=39 // pred_fallthru
        _
      // Predicated region
      $region61: #{mpnn_forward.1} parent=39 // pred_check
        %p1181 = pneg %p162
      $region62: #{mpnn_forward.1} parent=39 // pred_check_branch
        %1183 = sbr.rel (%p1181) target = $region64
      $region63: #{mpnn_forward.1} parent=39 // pred_region
        _
      $region64: #{mpnn_forward.1} parent=39 // pred_fallthru
        _
    $region40: #{mpnn_forward.1} parent=5 // pred_fallthru
      _
    %p1184 = scmp.le.s32.totalorder 2, %s11
    // Predicated region
    $region65: #{mpnn_forward.1} parent=5 // pred_check
      %p1185 = pneg %p1184
    $region66: #{mpnn_forward.1} parent=5 // pred_check_branch
      %1187 = sbr.rel (%p1185) target = $region68
    $region67: #{mpnn_forward.1} parent=5 // pred_region
      %s1188 = ssub.s32 %s11, 2
    $region68: #{mpnn_forward.1} parent=5 // pred_fallthru
      _
  $region6: #{mpnn_forward.1} parent=0 // loop_footer
    %s15 = sadd.s32 1, %s11
  $region7: #{mpnn_forward.1} parent=0 // loop_footer_branch
    %10 = sbr.rel target = $region3
  $region8: #{mpnn_forward.1} parent=0 // loop_exit
    _

// kernel: mpnn_forward.1
$region0: #{mpnn_forward.1}
  #allocation0 [shape = 'u32[]', space=smem, size = 0x4, offset = 0x4, fixed_abs, tag = 'smem constant byte address 0x4 - core index']
  #allocation1 [shape = 'u32[144,128]{1,0:T(1,128)}', space=vmem, size = 0x12000, scoped, tag = 'internal scratch']
  #allocation2 [shape = 'bf16[2,128,128]{2,1,0:T(16,128)(2,1)}', space=vmem, size = 0x10000, scoped, tag = 'scratch operand']
  #allocation3 [shape = 'bf16[128,128]{1,0:T(16,128)(2,1)}', space=vmem, size = 0x8000, scoped, tag = 'scratch operand']
  %s0 = inlined_call_operand.vmem [shape: bf16[128,128], index: 0, kind: input, shape index: {}]
  %s1 = inlined_call_operand.vmem [shape: bf16[128,128], index: 1, kind: input, shape index: {}]
  %s2 = inlined_call_operand.vmem [shape: bf16[128,128], index: 2, kind: input, shape index: {}]
  %s3 = inlined_call_operand.vmem [shape: bf16[2,128,128], index: 3, kind: input, shape index: {}]
  %s4 = inlined_call_operand.vmem [shape: f32[3,1,128], index: 4, kind: input, shape index: {}]
  %s5 = inlined_call_operand.vmem [shape: f32[128,128], index: 5, kind: output, shape index: {}]
  %s6 = sld [smem:[#allocation0]]
  $region69: #{mpnn_forward.1} parent=0
    _
  %s8 = ssub.s32 1, %s6
  %s9 = scalar_select 0, %s8, %s6
  loop: start=0, step=1, limit=5
  $region2: #{mpnn_forward.1} parent=0 // loop_pre_header
    _
  $region3: #{mpnn_forward.1} parent=0 // loop_header
    %s11 = sphi 0, %s15
    %p12 = scmp.ge.s32.totalorder %s11, 5
    %s18 = sphi 0, %s30
    %s19 = sphi 0, %s26
    %s20 = sphi 0, %s18
    %s21 = sphi 0, %s19
    %s22 = sphi 0, %s20
    %s23 = sphi 0, %s21
    %s31 = sphi 0, %s31
    %s33 = sphi 0, %s31
    %s34 = sphi 0, %s33
    %s48 = sphi 0, %s34
    %s52 = sphi 0, %s52
    %s54 = sphi 0, %s52
    %s55 = sphi 0, %s54
    %s69 = sphi 0, %s55
    %s73 = sphi 0, %s73
    %s75 = sphi 0, %s73
    %s76 = sphi 0, %s75
    %s90 = sphi 0, %s76
    %s102 = sphi 0, %s104
    %s105 = sphi 0, %s102
    %s106 = sphi 0, %s105
    %s122 = sphi 0, %s106
    %s128 = sphi 0, %s130
    %s131 = sphi 0, %s128
    %s132 = sphi 0, %s131
    %s148 = sphi 0, %s132
    %s152 = sphi 0, %s152
    %s154 = sphi 0, %s152
    %s155 = sphi 0, %s154
    %s169 = sphi 0, %s155
  $region4: #{mpnn_forward.1} parent=0 // loop_header_branch
    %14 = sbr.rel (%p12) target = $region8
  $region5: #{mpnn_forward.1} parent=0 // loop_body
    %s16 = ssub.s32 %s11, 1
    %s17 = ssub.s32 %s11, 2
    %s24 = sadd.s32 1, %s19
    %p25 = scmp.ge.s32.totalorder %s24, 1
    %s26 = scalar_select %p25, 0, %s24
    %s27 = sadd.s32 1, %s18
    %s28 = scalar_select %p25, %s27, %s18
    %p29 = scmp.ge.s32.totalorder %s28, 3
    %s30 = scalar_select %p29, 0, %s28
    %s32 = sadd.s32 %s31, 1
    %p35 = scmp.eq.s32.totalorder %s11, 2
    %p36 = scmp.ne.s32.totalorder %s31, %s33
    %p37 = scmp.eq.s32.totalorder %s11, 0
    %p38 = por %p36, %p37
    %p39 = scmp.ne.s32.totalorder %s31, %s33
    %p40 = scmp.eq.s32.totalorder %s16, 2
    %p41 = por %p39, %p40
    %p42 = scmp.ne.s32.totalorder %s33, %s34
    %p43 = scmp.eq.s32.totalorder %s16, 0
    %p44 = por %p42, %p43
    %p45 = scmp.ne.s32.totalorder %s33, %s34
    %p46 = scmp.eq.s32.totalorder %s17, 2
    %p47 = por %p45, %p46
    %p49 = scmp.ne.s32.totalorder %s34, %s48
    %p50 = scmp.eq.s32.totalorder %s17, 0
    %p51 = por %p49, %p50
    %s53 = sadd.s32 %s52, 1
    %p56 = scmp.eq.s32.totalorder %s11, 2
    %p57 = scmp.ne.s32.totalorder %s52, %s54
    %p58 = scmp.eq.s32.totalorder %s11, 0
    %p59 = por %p57, %p58
    %p60 = scmp.ne.s32.totalorder %s52, %s54
    %p61 = scmp.eq.s32.totalorder %s16, 2
    %p62 = por %p60, %p61
    %p63 = scmp.ne.s32.totalorder %s54, %s55
    %p64 = scmp.eq.s32.totalorder %s16, 0
    %p65 = por %p63, %p64
    %p66 = scmp.ne.s32.totalorder %s54, %s55
    %p67 = scmp.eq.s32.totalorder %s17, 2
    %p68 = por %p66, %p67
    %p70 = scmp.ne.s32.totalorder %s55, %s69
    %p71 = scmp.eq.s32.totalorder %s17, 0
    %p72 = por %p70, %p71
    %s74 = sadd.s32 %s73, 1
    %p77 = scmp.eq.s32.totalorder %s11, 2
    %p78 = scmp.ne.s32.totalorder %s73, %s75
    %p79 = scmp.eq.s32.totalorder %s11, 0
    %p80 = por %p78, %p79
    %p81 = scmp.ne.s32.totalorder %s73, %s75
    %p82 = scmp.eq.s32.totalorder %s16, 2
    %p83 = por %p81, %p82
    %p84 = scmp.ne.s32.totalorder %s75, %s76
    %p85 = scmp.eq.s32.totalorder %s16, 0
    %p86 = por %p84, %p85
    %p87 = scmp.ne.s32.totalorder %s75, %s76
    %p88 = scmp.eq.s32.totalorder %s17, 2
    %p89 = por %p87, %p88
    %p91 = scmp.ne.s32.totalorder %s76, %s90
    %p92 = scmp.eq.s32.totalorder %s17, 0
    %p93 = por %p91, %p92
    %s94 = ssub.s32 %s18, 1
    %p95 = scmp.gt.s32.totalorder %s94, 0
    %s96 = scalar_select %p95, %s94, 0
    %s97 = ssub.s32 %s30, 1
    %p98 = scmp.gt.s32.totalorder %s97, 0
    %s99 = scalar_select %p98, %s97, 0
    %s100 = ssub.s32 %s96, %s99
    %p101 = scmp.eq.s32.totalorder %s100, 0
    %s103 = sadd.s32 %s102, 1
    %s104 = scalar_select %p101, %s102, %s103
    %p107 = pneg %p101
    %p108 = scmp.eq.s32.totalorder %s11, 2
    %p109 = por %p107, %p108
    %p110 = scmp.ne.s32.totalorder %s102, %s105
    %p111 = scmp.eq.s32.totalorder %s11, 0
    %p112 = por %p110, %p111
    %p113 = scmp.ne.s32.totalorder %s102, %s105
    %p114 = scmp.eq.s32.totalorder %s16, 2
    %p115 = por %p113, %p114
    %p116 = scmp.ne.s32.totalorder %s105, %s106
    %p117 = scmp.eq.s32.totalorder %s16, 0
    %p118 = por %p116, %p117
    %p119 = scmp.ne.s32.totalorder %s105, %s106
    %p120 = scmp.eq.s32.totalorder %s17, 2
    %p121 = por %p119, %p120
    %p123 = scmp.ne.s32.totalorder %s106, %s122
    %p124 = scmp.eq.s32.totalorder %s17, 0
    %p125 = por %p123, %p124
    %s126 = ssub.s32 %s18, %s30
    %p127 = scmp.eq.s32.totalorder %s126, 0
    %s129 = sadd.s32 %s128, 1
    %s130 = scalar_select %p127, %s128, %s129
    %p133 = pneg %p127
    %p134 = scmp.eq.s32.totalorder %s11, 2
    %p135 = por %p133, %p134
    %p136 = scmp.ne.s32.totalorder %s128, %s131
    %p137 = scmp.eq.s32.totalorder %s11, 0
    %p138 = por %p136, %p137
    %p139 = scmp.ne.s32.totalorder %s128, %s131
    %p140 = scmp.eq.s32.totalorder %s16, 2
    %p141 = por %p139, %p140
    %p142 = scmp.ne.s32.totalorder %s131, %s132
    %p143 = scmp.eq.s32.totalorder %s16, 0
    %p144 = por %p142, %p143
    %p145 = scmp.ne.s32.totalorder %s131, %s132
    %p146 = scmp.eq.s32.totalorder %s17, 2
    %p147 = por %p145, %p146
    %p149 = scmp.ne.s32.totalorder %s132, %s148
    %p150 = scmp.eq.s32.totalorder %s17, 0
    %p151 = por %p149, %p150
    %s153 = sadd.s32 %s152, 1
    %p156 = scmp.eq.s32.totalorder %s11, 2
    %p157 = scmp.ne.s32.totalorder %s152, %s154
    %p158 = scmp.eq.s32.totalorder %s11, 0
    %p159 = por %p157, %p158
    %p160 = scmp.ne.s32.totalorder %s152, %s154
    %p161 = scmp.eq.s32.totalorder %s16, 2
    %p162 = por %p160, %p161
    %p163 = scmp.ne.s32.totalorder %s154, %s155
    %p164 = scmp.eq.s32.totalorder %s16, 0
    %p165 = por %p163, %p164
    %p166 = scmp.ne.s32.totalorder %s154, %s155
    %p167 = scmp.eq.s32.totalorder %s17, 2
    %p168 = por %p166, %p167
    %p170 = scmp.ne.s32.totalorder %s155, %s169
    %p171 = scmp.eq.s32.totalorder %s17, 0
    %p172 = por %p170, %p171
    %p173 = scmp.le.s32.totalorder 1, %s11
    %p174 = scmp.lt.s32.totalorder %s11, 4
    %p175 = pnand %p173, %p174
    %p176 = pneg %p175
    // Predicated region
    $region9: #{mpnn_forward.1} parent=5 // pred_check
      _
    $region10: #{mpnn_forward.1} parent=5 // pred_check_branch
      %178 = sbr.rel (%p175) target = $region12
    $region11: #{mpnn_forward.1} parent=5 // pred_region
      %s179 = ssub.s32 %s11, 1
      // Predicated region
      $region13: #{mpnn_forward.1} parent=11 // pred_check
        %p180 = pneg %p44
      $region14: #{mpnn_forward.1} parent=11 // pred_check_branch
        %182 = sbr.rel (%p180) target = $region16
      $region15: #{mpnn_forward.1} parent=11 // pred_region
        _
      $region16: #{mpnn_forward.1} parent=11 // pred_fallthru
        _
      // Predicated region
      $region17: #{mpnn_forward.1} parent=11 // pred_check
        %p183 = pneg %p65
      $region18: #{mpnn_forward.1} parent=11 // pred_check_branch
        %185 = sbr.rel (%p183) target = $region20
      $region19: #{mpnn_forward.1} parent=11 // pred_region
        _
      $region20: #{mpnn_forward.1} parent=11 // pred_fallthru
        _
      // Predicated region
      $region21: #{mpnn_forward.1} parent=11 // pred_check
        %p186 = pneg %p86
      $region22: #{mpnn_forward.1} parent=11 // pred_check_branch
        %188 = sbr.rel (%p186) target = $region24
      $region23: #{mpnn_forward.1} parent=11 // pred_region
        _
      $region24: #{mpnn_forward.1} parent=11 // pred_fallthru
        _
    $region12: #{mpnn_forward.1} parent=5 // pred_fallthru
      _
    %p189 = scmp.lt.s32.totalorder %s11, 3
    // Predicated region
    $region25: #{mpnn_forward.1} parent=5 // pred_check
      %p190 = pneg %p189
    $region26: #{mpnn_forward.1} parent=5 // pred_check_branch
      %192 = sbr.rel (%p190) target = $region28
    $region27: #{mpnn_forward.1} parent=5 // pred_region
      // Predicated region
      $region29: #{mpnn_forward.1} parent=27 // pred_check
        %p193 = pneg %p112
      $region30: #{mpnn_forward.1} parent=27 // pred_check_branch
        %195 = sbr.rel (%p193) target = $region32
      $region31: #{mpnn_forward.1} parent=27 // pred_region
        %s196 = ssub.s32 %s18, 1
        %p197 = scmp.gt.s32.totalorder %s196, 0
        %s198 = scalar_select %p197, %s196, 0
        %p199 = scmp.lt.s32.totalorder %s198, 1
        %s200 = scalar_select %p199, %s198, 1
        %s201 = smul.addr %s200, 16
        %s202 = smul.addr %s201, 4
        %s203 = scalar_lea.vmem %s3, %s202
        %s204 = ssub.s32 %s18, 1
        %p205 = scmp.gt.s32.totalorder %s204, 0
        %s206 = scalar_select %p205, %s204, 0
      $region32: #{mpnn_forward.1} parent=27 // pred_fallthru
        _
      // Predicated region
      $region33: #{mpnn_forward.1} parent=27 // pred_check
        %p207 = pneg %p138
      $region34: #{mpnn_forward.1} parent=27 // pred_check_branch
        %209 = sbr.rel (%p207) target = $region36
      $region35: #{mpnn_forward.1} parent=27 // pred_region
        %p210 = scmp.lt.s32.totalorder %s18, 2
        %s211 = scalar_select %p210, %s18, 2
        %s212 = scalar_lea.vmem %s4, %s211
      $region36: #{mpnn_forward.1} parent=27 // pred_fallthru
        _
    $region28: #{mpnn_forward.1} parent=5 // pred_fallthru
      _
    %p213 = scmp.le.s32.totalorder 1, %s11
    %p214 = scmp.lt.s32.totalorder %s11, 4
    %p215 = pnand %p213, %p214
    %p216 = pneg %p215
    // Predicated region
    $region37: #{mpnn_forward.1} parent=5 // pred_check
      _
    $region38: #{mpnn_forward.1} parent=5 // pred_check_branch
      %218 = sbr.rel (%p215) target = $region40
    $region39: #{mpnn_forward.1} parent=5 // pred_region
      %s219 = ssub.s32 %s11, 1
      %p220 = pneg %p44
      %p221 = pneg %p41
      %p222 = pneg %p65
      %p223 = pneg %p62
      %p224 = pneg %p86
      %p225 = pneg %p83
      %s226 = ssub.s32 %s20, 1
      %p227 = scmp.gt.s32.totalorder %s226, 0
      %s228 = scalar_select %p227, %s226, 0
      %p229 = scmp.lt.s32.totalorder %s228, 1
      %s230 = scalar_select %p229, %s228, 1
      %s231 = smul.addr %s230, 16
      %s232 = smul.addr %s231, 4
      %s233 = scalar_lea.vmem %s3, %s232
      %p234 = pneg %p118
      %p235 = pneg %p115
      %p236 = scmp.lt.s32.totalorder %s20, 2
      %s237 = scalar_select %p236, %s20, 2
      %s238 = scalar_lea.vmem %s4, %s237
      %p239 = pneg %p144
      %p240 = pneg %p141
      %p241 = pneg %p165
      %p242 = pneg %p162
      %s243 = ssub.s32 %s20, 1
      %p244 = scmp.gt.s32.totalorder %s243, 0
      %s245 = scalar_select %p244, %s243, 0
      %p246 = scmp.lt.s32.totalorder %s245, 1
      %s247 = scalar_select %p246, %s245, 1
      %s248 = smul.addr %s247, 16
      %s249 = smul.addr %s248, 4
      %s250 = scalar_lea.vmem %s3, %s249
      %s251 = ssub.s32 %s20, 1
      %p252 = scmp.gt.s32.totalorder %s251, 0
      %s253 = scalar_select %p252, %s251, 0
      %p254 = scmp.lt.s32.totalorder %s20, 2
      %s255 = scalar_select %p254, %s20, 2
      %s256 = scalar_lea.vmem %s4, %s255
      %s258 = smul.u32 %s21, 128
      %p259 = scmp.eq.s32.totalorder %s21, 0
      %p260 = scmp.eq.s32.totalorder %s20, 0
      %p261 = pnand %p259, %p260
      %p262 = pneg %p261
      // Predicated region
      $region41: #{mpnn_forward.1} parent=39 // pred_check
        _
      $region42: #{mpnn_forward.1} parent=39 // pred_check_branch
        %264 = sbr.rel (%p261) target = $region44
      $region43: #{mpnn_forward.1} parent=39 // pred_region
        %v265 = vld [vmem:[%s1] sm:$0xf]
        %v266 = vld [vmem:[%s1 + $0x4] sm:$0xf]
        %v267 = vld [vmem:[%s1 + $0x8] sm:$0xf]
        %v268 = vld [vmem:[%s1 + $0xc] sm:$0xf]
        %v269 = vld [vmem:[%s1 + $0x10] sm:$0xf]
        %v270 = vld [vmem:[%s1 + $0x14] sm:$0xf]
        %v271 = vld [vmem:[%s1 + $0x18] sm:$0xf]
        %v272 = vld [vmem:[%s1 + $0x1c] sm:$0xf]
        %v273 = vld [vmem:[%s1 + $0x20] sm:$0xf]
        %v274 = vld [vmem:[%s1 + $0x24] sm:$0xf]
        %v275 = vld [vmem:[%s1 + $0x28] sm:$0xf]
        %v276 = vld [vmem:[%s1 + $0x2c] sm:$0xf]
        %v277 = vld [vmem:[%s1 + $0x30] sm:$0xf]
        %v278 = vld [vmem:[%s1 + $0x34] sm:$0xf]
        %v279 = vld [vmem:[%s1 + $0x38] sm:$0xf]
        %v280 = vld [vmem:[%s1 + $0x3c] sm:$0xf]
        %v281 = vld [vmem:[%s2] sm:$0xf]
        %v282 = vld [vmem:[%s2 + $0x4] sm:$0xf]
        %v283 = vld [vmem:[%s2 + $0x8] sm:$0xf]
        %v284 = vld [vmem:[%s2 + $0xc] sm:$0xf]
        %v285 = vld [vmem:[%s2 + $0x10] sm:$0xf]
        %v286 = vld [vmem:[%s2 + $0x14] sm:$0xf]
        %v287 = vld [vmem:[%s2 + $0x18] sm:$0xf]
        %v288 = vld [vmem:[%s2 + $0x1c] sm:$0xf]
        %v289 = vld [vmem:[%s2 + $0x20] sm:$0xf]
        %v290 = vld [vmem:[%s2 + $0x24] sm:$0xf]
        %v291 = vld [vmem:[%s2 + $0x28] sm:$0xf]
        %v292 = vld [vmem:[%s2 + $0x2c] sm:$0xf]
        %v293 = vld [vmem:[%s2 + $0x30] sm:$0xf]
        %v294 = vld [vmem:[%s2 + $0x34] sm:$0xf]
        %v295 = vld [vmem:[%s2 + $0x38] sm:$0xf]
        %v296 = vld [vmem:[%s2 + $0x3c] sm:$0xf]
        %v313 = vunpack.c.l.b16 %v265
        %v314 = vunpack.c.l.b16 %v266
        %v315 = vunpack.c.l.b16 %v267
        %v316 = vunpack.c.l.b16 %v268
        %v317 = vunpack.c.l.b16 %v269
        %v318 = vunpack.c.l.b16 %v270
        %v319 = vunpack.c.l.b16 %v271
        %v320 = vunpack.c.l.b16 %v272
        %v321 = vunpack.c.l.b16 %v273
        %v322 = vunpack.c.l.b16 %v274
        %v323 = vunpack.c.l.b16 %v275
        %v324 = vunpack.c.l.b16 %v276
        %v325 = vunpack.c.l.b16 %v277
        %v326 = vunpack.c.l.b16 %v278
        %v327 = vunpack.c.l.b16 %v279
        %v328 = vunpack.c.l.b16 %v280
        %v329 = vpack.c.b16 %v314, %v313
        %v330 = vpack.c.b16 %v316, %v315
        %v331 = vpack.c.b16 %v318, %v317
        %v332 = vpack.c.b16 %v320, %v319
        %v333 = vpack.c.b16 %v322, %v321
        %v334 = vpack.c.b16 %v324, %v323
        %v335 = vpack.c.b16 %v326, %v325
        %v336 = vpack.c.b16 %v328, %v327
        %v361 = vunpack.c.l.b16 %v281
        %v362 = vunpack.c.l.b16 %v282
        %v363 = vunpack.c.l.b16 %v283
        %v364 = vunpack.c.l.b16 %v284
        %v365 = vunpack.c.l.b16 %v285
        %v366 = vunpack.c.l.b16 %v286
        %v367 = vunpack.c.l.b16 %v287
        %v368 = vunpack.c.l.b16 %v288
        %v369 = vunpack.c.l.b16 %v289
        %v370 = vunpack.c.l.b16 %v290
        %v371 = vunpack.c.l.b16 %v291
        %v372 = vunpack.c.l.b16 %v292
        %v373 = vunpack.c.l.b16 %v293
        %v374 = vunpack.c.l.b16 %v294
        %v375 = vunpack.c.l.b16 %v295
        %v376 = vunpack.c.l.b16 %v296
        %v377 = vpack.c.b16 %v362, %v361
        %v378 = vpack.c.b16 %v364, %v363
        %v379 = vpack.c.b16 %v366, %v365
        %v380 = vpack.c.b16 %v368, %v367
        %v381 = vpack.c.b16 %v370, %v369
        %v382 = vpack.c.b16 %v372, %v371
        %v383 = vpack.c.b16 %v374, %v373
        %v384 = vpack.c.b16 %v376, %v375
        %393 = vmatprep.subr.bf16.mxu0 0
        %394 = vmatpush1.bf16.msra.mxu0 %v377
        %395 = vmatprep.subr.bf16.mxu0 0
        %396 = vmatpush1.bf16.msra.mxu0 %v378
        %397 = vmatprep.subr.bf16.mxu0 0
        %398 = vmatpush1.bf16.msra.mxu0 %v379
        %399 = vmatprep.subr.bf16.mxu0 0
        %400 = vmatpush1.bf16.msra.mxu0 %v380
        %401 = vmatprep.subr.bf16.mxu0 0
        %402 = vmatpush1.bf16.msra.mxu0 %v381
        %403 = vmatprep.subr.bf16.mxu0 0
        %404 = vmatpush1.bf16.msra.mxu0 %v382
        %405 = vmatprep.subr.bf16.mxu0 0
        %406 = vmatpush1.bf16.msra.mxu0 %v383
        %407 = vmatprep.subr.bf16.mxu0 0
        %408 = vmatpush1.bf16.msra.mxu0 %v384
        %409 = vmatprep.subr.bf16.mxu0 0
        %410 = vmatpush1.bf16.msra.mxu0 0
        %411 = vmatprep.subr.bf16.mxu0 0
        %412 = vmatpush1.bf16.msra.mxu0 0
        %413 = vmatprep.subr.bf16.mxu0 0
        %414 = vmatpush1.bf16.msra.mxu0 0
        %415 = vmatprep.subr.bf16.mxu0 0
        %416 = vmatpush1.bf16.msra.mxu0 0
        %417 = vmatprep.subr.bf16.mxu0 0
        %418 = vmatpush1.bf16.msra.mxu0 0
        %419 = vmatprep.subr.bf16.mxu0 0
        %420 = vmatpush1.bf16.msra.mxu0 0
        %421 = vmatprep.subr.bf16.mxu0 0
        %422 = vmatpush1.bf16.msra.mxu0 0
        %423 = vmatprep.subr.bf16.mxu0 0
        %424 = vmatpush1.bf16.msra.mxu0 0
        %425 = vmatprep.mubr.bf16.mxu0 0
        %426 = vmatmul.mubr.bf16.gmra.mrb[0].mxu0 %v329
        %v427 = vpop.f32.mrb[0].mxu0
        %v428 = vadd.f32 0.0, %v427
        %v429 = vpop.f32.mrb[0].mxu0
        %v430 = vpop.f32.mrb[0].mxu0
        %v431 = vadd.f32 0.0, %v430
        %v432 = vpop.f32.mrb[0].mxu0
        %433 = vmatprep.mubr.bf16.mxu0 0
        %434 = vmatmul.mubr.bf16.gmra.mrb[0].mxu0 %v330
        %v435 = vpop.f32.mrb[0].mxu0
        %v436 = vadd.f32 0.0, %v435
        %v437 = vpop.f32.mrb[0].mxu0
        %v438 = vpop.f32.mrb[0].mxu0
        %v439 = vadd.f32 0.0, %v438
        %v440 = vpop.f32.mrb[0].mxu0
        %441 = vmatprep.mubr.bf16.mxu0 0
        %442 = vmatmul.mubr.bf16.gmra.mrb[0].mxu0 %v331
        %v443 = vpop.f32.mrb[0].mxu0
        %v444 = vadd.f32 0.0, %v443
        %v445 = vpop.f32.mrb[0].mxu0
        %v446 = vpop.f32.mrb[0].mxu0
        %v447 = vadd.f32 0.0, %v446
        %v448 = vpop.f32.mrb[0].mxu0
        %449 = vmatprep.mubr.bf16.mxu0 0
        %450 = vmatmul.mubr.bf16.gmra.mrb[0].mxu0 %v332
        %v451 = vpop.f32.mrb[0].mxu0
        %v452 = vadd.f32 0.0, %v451
        %v453 = vpop.f32.mrb[0].mxu0
        %v454 = vpop.f32.mrb[0].mxu0
        %v455 = vadd.f32 0.0, %v454
        %v456 = vpop.f32.mrb[0].mxu0
        %457 = vmatprep.mubr.bf16.mxu0 0
        %458 = vmatmul.mubr.bf16.gmra.mrb[0].mxu0 %v333
        %v459 = vpop.f32.mrb[0].mxu0
        %v460 = vadd.f32 0.0, %v459
        %v461 = vpop.f32.mrb[0].mxu0
        %v462 = vpop.f32.mrb[0].mxu0
        %v463 = vadd.f32 0.0, %v462
        %v464 = vpop.f32.mrb[0].mxu0
        %465 = vmatprep.mubr.bf16.mxu0 0
        %466 = vmatmul.mubr.bf16.gmra.mrb[0].mxu0 %v334
        %v467 = vpop.f32.mrb[0].mxu0
        %v468 = vadd.f32 0.0, %v467
        %v469 = vpop.f32.mrb[0].mxu0
        %v470 = vpop.f32.mrb[0].mxu0
        %v471 = vadd.f32 0.0, %v470
        %v472 = vpop.f32.mrb[0].mxu0
        %473 = vmatprep.mubr.bf16.mxu0 0
        %474 = vmatmul.mubr.bf16.gmra.mrb[0].mxu0 %v335
        %v475 = vpop.f32.mrb[0].mxu0
        %v476 = vadd.f32 0.0, %v475
        %v477 = vpop.f32.mrb[0].mxu0
        %v478 = vpop.f32.mrb[0].mxu0
        %v479 = vadd.f32 0.0, %v478
        %v480 = vpop.f32.mrb[0].mxu0
        %481 = vmatprep.mubr.bf16.mxu0 0
        %482 = vmatmul.mubr.bf16.gmra.mrb[0].mxu0 %v336
        %v483 = vpop.f32.mrb[0].mxu0
        %v484 = vadd.f32 0.0, %v483
        %v485 = vpop.f32.mrb[0].mxu0
        %v486 = vpop.f32.mrb[0].mxu0
        %v487 = vadd.f32 0.0, %v486
        %v488 = vpop.f32.mrb[0].mxu0
        %489 = vdwg.mxu0
        %v490 = vpack.c.bf16 %v431, %v428
        %v491 = vpack.c.bf16 %v439, %v436
        %v492 = vpack.c.bf16 %v447, %v444
        %v493 = vpack.c.bf16 %v455, %v452
        %v494 = vpack.c.bf16 %v463, %v460
        %v495 = vpack.c.bf16 %v471, %v468
        %v496 = vpack.c.bf16 %v479, %v476
        %v497 = vpack.c.bf16 %v487, %v484
        %498 = vst [vmem:[#allocation3] sm:$0xff] %v490
        %499 = vst [vmem:[#allocation3 + $0x8] sm:$0xff] %v491
        %500 = vst [vmem:[#allocation3 + $0x10] sm:$0xff] %v492
        %501 = vst [vmem:[#allocation3 + $0x18] sm:$0xff] %v493
        %502 = vst [vmem:[#allocation3 + $0x20] sm:$0xff] %v494
        %503 = vst [vmem:[#allocation3 + $0x28] sm:$0xff] %v495
        %504 = vst [vmem:[#allocation3 + $0x30] sm:$0xff] %v496
        %505 = vst [vmem:[#allocation3 + $0x38] sm:$0xff] %v497
      $region44: #{mpnn_forward.1} parent=39 // pred_fallthru
        _
      %p506 = scmp.gt.s32.totalorder %s20, 0
      %p507 = pnand %p259, %p506
      %p508 = pneg %p507
      // Predicated region
      $region45: #{mpnn_forward.1} parent=39 // pred_check
        _
      $region46: #{mpnn_forward.1} parent=39 // pred_check_branch
        %510 = sbr.rel (%p507) target = $region48
      $region47: #{mpnn_forward.1} parent=39 // pred_region
        %s511 = sadd.s32 %s20, 1
        %p512 = scmp.lt.s32.totalorder %s511, 0
        %s513 = ssub.s32 0, %s511
        %s514 = scalar_select %p512, %s513, %s511
        %s515 = sand.u32 %s514, 1
        %s516 = ssub.s32 0, %s515
        %s517 = scalar_select %p512, %s516, %s515
        %p518 = scmp.ne.s32.totalorder %s517, 0
        %p519 = scmp.lt.s32.totalorder %s517, 0
        %p520 = pnand %p519, %p518
        %p521 = pneg %p520
        %s522 = sadd.s32 %s517, 2
        %s523 = scalar_select %p521, %s522, %s517
        %s524 = smul.u32 %s523, 8
        %s525 = smul.addr %s524, 8
        %s526 = scalar_lea.vmem [#allocation2], %s525
        %v527 = vld [vmem:[%s526] sm:$0xff]
        %v528 = vld [vmem:[%s526 + $0x8] sm:$0xff]
        %v529 = vld [vmem:[%s526 + $0x10] sm:$0xff]
        %v530 = vld [vmem:[%s526 + $0x18] sm:$0xff]
        %v531 = vld [vmem:[%s526 + $0x20] sm:$0xff]
        %v532 = vld [vmem:[%s526 + $0x28] sm:$0xff]
        %v533 = vld [vmem:[%s526 + $0x30] sm:$0xff]
        %v534 = vld [vmem:[%s526 + $0x38] sm:$0xff]
        %v535 = vld [vmem:[%s250] sm:$0xf]
        %v536 = vld [vmem:[%s250 + $0x4] sm:$0xf]
        %v537 = vld [vmem:[%s250 + $0x8] sm:$0xf]
        %v538 = vld [vmem:[%s250 + $0xc] sm:$0xf]
        %v539 = vld [vmem:[%s250 + $0x10] sm:$0xf]
        %v540 = vld [vmem:[%s250 + $0x14] sm:$0xf]
        %v541 = vld [vmem:[%s250 + $0x18] sm:$0xf]
        %v542 = vld [vmem:[%s250 + $0x1c] sm:$0xf]
        %v543 = vld [vmem:[%s250 + $0x20] sm:$0xf]
        %v544 = vld [vmem:[%s250 + $0x24] sm:$0xf]
        %v545 = vld [vmem:[%s250 + $0x28] sm:$0xf]
        %v546 = vld [vmem:[%s250 + $0x2c] sm:$0xf]
        %v547 = vld [vmem:[%s250 + $0x30] sm:$0xf]
        %v548 = vld [vmem:[%s250 + $0x34] sm:$0xf]
        %v549 = vld [vmem:[%s250 + $0x38] sm:$0xf]
        %v550 = vld [vmem:[%s250 + $0x3c] sm:$0xf]
        %v567 = vunpack.c.l.b16 %v535
        %v568 = vunpack.c.l.b16 %v536
        %v569 = vunpack.c.l.b16 %v537
        %v570 = vunpack.c.l.b16 %v538
        %v571 = vunpack.c.l.b16 %v539
        %v572 = vunpack.c.l.b16 %v540
        %v573 = vunpack.c.l.b16 %v541
        %v574 = vunpack.c.l.b16 %v542
        %v575 = vunpack.c.l.b16 %v543
        %v576 = vunpack.c.l.b16 %v544
        %v577 = vunpack.c.l.b16 %v545
        %v578 = vunpack.c.l.b16 %v546
        %v579 = vunpack.c.l.b16 %v547
        %v580 = vunpack.c.l.b16 %v548
        %v581 = vunpack.c.l.b16 %v549
        %v582 = vunpack.c.l.b16 %v550
        %v583 = vpack.c.b16 %v568, %v567
        %v584 = vpack.c.b16 %v570, %v569
        %v585 = vpack.c.b16 %v572, %v571
        %v586 = vpack.c.b16 %v574, %v573
        %v587 = vpack.c.b16 %v576, %v575
        %v588 = vpack.c.b16 %v578, %v577
        %v589 = vpack.c.b16 %v580, %v579
        %v590 = vpack.c.b16 %v582, %v581
        %599 = vmatprep.subr.bf16.mxu0 0
        %600 = vmatpush1.bf16.msra.mxu0 %v583
        %601 = vmatprep.subr.bf16.mxu0 0
        %602 = vmatpush1.bf16.msra.mxu0 %v584
        %603 = vmatprep.subr.bf16.mxu0 0
        %604 = vmatpush1.bf16.msra.mxu0 %v585
        %605 = vmatprep.subr.bf16.mxu0 0
        %606 = vmatpush1.bf16.msra.mxu0 %v586
        %607 = vmatprep.subr.bf16.mxu0 0
        %608 = vmatpush1.bf16.msra.mxu0 %v587
        %609 = vmatprep.subr.bf16.mxu0 0
        %610 = vmatpush1.bf16.msra.mxu0 %v588
        %611 = vmatprep.subr.bf16.mxu0 0
        %612 = vmatpush1.bf16.msra.mxu0 %v589
        %613 = vmatprep.subr.bf16.mxu0 0
        %614 = vmatpush1.bf16.msra.mxu0 %v590
        %615 = vmatprep.subr.bf16.mxu0 0
        %616 = vmatpush1.bf16.msra.mxu0 0
        %617 = vmatprep.subr.bf16.mxu0 0
        %618 = vmatpush1.bf16.msra.mxu0 0
        %619 = vmatprep.subr.bf16.mxu0 0
        %620 = vmatpush1.bf16.msra.mxu0 0
        %621 = vmatprep.subr.bf16.mxu0 0
        %622 = vmatpush1.bf16.msra.mxu0 0
        %623 = vmatprep.subr.bf16.mxu0 0
        %624 = vmatpush1.bf16.msra.mxu0 0
        %625 = vmatprep.subr.bf16.mxu0 0
        %626 = vmatpush1.bf16.msra.mxu0 0
        %627 = vmatprep.subr.bf16.mxu0 0
        %628 = vmatpush1.bf16.msra.mxu0 0
        %629 = vmatprep.subr.bf16.mxu0 0
        %630 = vmatpush1.bf16.msra.mxu0 0
        %631 = vmatprep.mubr.bf16.mxu0 0
        %632 = vmatmul.mubr.bf16.gmra.mrb[0].mxu0 %v527
        %v633 = vpop.f32.mrb[0].mxu0
        %v634 = vadd.f32 0.0, %v633
        %v635 = vpop.f32.mrb[0].mxu0
        %v636 = vpop.f32.mrb[0].mxu0
        %v637 = vadd.f32 0.0, %v636
        %v638 = vpop.f32.mrb[0].mxu0
        %639 = vmatprep.mubr.bf16.mxu0 0
        %640 = vmatmul.mubr.bf16.gmra.mrb[0].mxu0 %v528
        %v641 = vpop.f32.mrb[0].mxu0
        %v642 = vadd.f32 0.0, %v641
        %v643 = vpop.f32.mrb[0].mxu0
        %v644 = vpop.f32.mrb[0].mxu0
        %v645 = vadd.f32 0.0, %v644
        %v646 = vpop.f32.mrb[0].mxu0
        %647 = vmatprep.mubr.bf16.mxu0 0
        %648 = vmatmul.mubr.bf16.gmra.mrb[0].mxu0 %v529
        %v649 = vpop.f32.mrb[0].mxu0
        %v650 = vadd.f32 0.0, %v649
        %v651 = vpop.f32.mrb[0].mxu0
        %v652 = vpop.f32.mrb[0].mxu0
        %v653 = vadd.f32 0.0, %v652
        %v654 = vpop.f32.mrb[0].mxu0
        %655 = vmatprep.mubr.bf16.mxu0 0
        %656 = vmatmul.mubr.bf16.gmra.mrb[0].mxu0 %v530
        %v657 = vpop.f32.mrb[0].mxu0
        %v658 = vadd.f32 0.0, %v657
        %v659 = vpop.f32.mrb[0].mxu0
        %v660 = vpop.f32.mrb[0].mxu0
        %v661 = vadd.f32 0.0, %v660
        %v662 = vpop.f32.mrb[0].mxu0
        %663 = vmatprep.mubr.bf16.mxu0 0
        %664 = vmatmul.mubr.bf16.gmra.mrb[0].mxu0 %v531
        %v665 = vpop.f32.mrb[0].mxu0
        %v666 = vadd.f32 0.0, %v665
        %v667 = vpop.f32.mrb[0].mxu0
        %v668 = vpop.f32.mrb[0].mxu0
        %v669 = vadd.f32 0.0, %v668
        %v670 = vpop.f32.mrb[0].mxu0
        %671 = vmatprep.mubr.bf16.mxu0 0
        %672 = vmatmul.mubr.bf16.gmra.mrb[0].mxu0 %v532
        %v673 = vpop.f32.mrb[0].mxu0
        %v674 = vadd.f32 0.0, %v673
        %v675 = vpop.f32.mrb[0].mxu0
        %v676 = vpop.f32.mrb[0].mxu0
        %v677 = vadd.f32 0.0, %v676
        %v678 = vpop.f32.mrb[0].mxu0
        %679 = vmatprep.mubr.bf16.mxu0 0
        %680 = vmatmul.mubr.bf16.gmra.mrb[0].mxu0 %v533
        %v681 = vpop.f32.mrb[0].mxu0
        %v682 = vadd.f32 0.0, %v681
        %v683 = vpop.f32.mrb[0].mxu0
        %v684 = vpop.f32.mrb[0].mxu0
        %v685 = vadd.f32 0.0, %v684
        %v686 = vpop.f32.mrb[0].mxu0
        %687 = vmatprep.mubr.bf16.mxu0 0
        %688 = vmatmul.mubr.bf16.gmra.mrb[0].mxu0 %v534
        %v689 = vpop.f32.mrb[0].mxu0
        %v690 = vadd.f32 0.0, %v689
        %v691 = vpop.f32.mrb[0].mxu0
        %v692 = vpop.f32.mrb[0].mxu0
        %v693 = vadd.f32 0.0, %v692
        %v694 = vpop.f32.mrb[0].mxu0
        %695 = vdwg.mxu0
        %v696 = vpack.c.bf16 %v637, %v634
        %v697 = vpack.c.bf16 %v645, %v642
        %v698 = vpack.c.bf16 %v653, %v650
        %v699 = vpack.c.bf16 %v661, %v658
        %v700 = vpack.c.bf16 %v669, %v666
        %v701 = vpack.c.bf16 %v677, %v674
        %v702 = vpack.c.bf16 %v685, %v682
        %v703 = vpack.c.bf16 %v693, %v690
        %704 = vst [vmem:[#allocation3] sm:$0xff] %v696
        %705 = vst [vmem:[#allocation3 + $0x8] sm:$0xff] %v697
        %706 = vst [vmem:[#allocation3 + $0x10] sm:$0xff] %v698
        %707 = vst [vmem:[#allocation3 + $0x18] sm:$0xff] %v699
        %708 = vst [vmem:[#allocation3 + $0x20] sm:$0xff] %v700
        %709 = vst [vmem:[#allocation3 + $0x28] sm:$0xff] %v701
        %710 = vst [vmem:[#allocation3 + $0x30] sm:$0xff] %v702
        %711 = vst [vmem:[#allocation3 + $0x38] sm:$0xff] %v703
      $region48: #{mpnn_forward.1} parent=39 // pred_fallthru
        _
      %s712 = sshra.s32 %s258, 3
      %s713 = sand.u32 %s258, 7
      %s714 = smul.addr %s712, 4
      %s715 = scalar_lea.vmem %s0, %s714
      %v716 = vld [vmem:[%s715] sm:$0xf]
      %v717 = vld [vmem:[%s715 + $0x4] sm:$0xf]
      %v718 = vld [vmem:[%s715 + $0x8] sm:$0xf]
      %v719 = vld [vmem:[%s715 + $0xc] sm:$0xf]
      %v720 = vld [vmem:[%s715 + $0x10] sm:$0xf]
      %v721 = vld [vmem:[%s715 + $0x14] sm:$0xf]
      %v722 = vld [vmem:[%s715 + $0x18] sm:$0xf]
      %v723 = vld [vmem:[%s715 + $0x1c] sm:$0xf]
      %v724 = vld [vmem:[%s715 + $0x20] sm:$0xf]
      %v725 = vld [vmem:[%s715 + $0x24] sm:$0xf]
      %v726 = vld [vmem:[%s715 + $0x28] sm:$0xf]
      %v727 = vld [vmem:[%s715 + $0x2c] sm:$0xf]
      %v728 = vld [vmem:[%s715 + $0x30] sm:$0xf]
      %v729 = vld [vmem:[%s715 + $0x34] sm:$0xf]
      %v730 = vld [vmem:[%s715 + $0x38] sm:$0xf]
      %v731 = vld [vmem:[%s715 + $0x3c] sm:$0xf]
      %v732 = vld [vmem:[#allocation3] sm:$0xff]
      %v733 = vld [vmem:[#allocation3 + $0x8] sm:$0xff]
      %v734 = vld [vmem:[#allocation3 + $0x10] sm:$0xff]
      %v735 = vld [vmem:[#allocation3 + $0x18] sm:$0xff]
      %v736 = vld [vmem:[#allocation3 + $0x20] sm:$0xff]
      %v737 = vld [vmem:[#allocation3 + $0x28] sm:$0xff]
      %v738 = vld [vmem:[#allocation3 + $0x30] sm:$0xff]
      %v739 = vld [vmem:[#allocation3 + $0x38] sm:$0xff]
      %v740 = vld [vmem:[%s256] sm:$0x1]
      %v742 = vlaneseq
      %v743 = vshrl.u32 %v742, 7
      %v744 = vsub.s32 0, %v743
      %v745 = vrot.slane %v740, %v744
      %v763 = vunpack.c.l.b16 %v716
      %v764 = vunpack.c.l.b16 %v717
      %v765 = vunpack.c.l.b16 %v718
      %v766 = vunpack.c.l.b16 %v719
      %v767 = vunpack.c.l.b16 %v720
      %v768 = vunpack.c.l.b16 %v721
      %v769 = vunpack.c.l.b16 %v722
      %v770 = vunpack.c.l.b16 %v723
      %v771 = vunpack.c.l.b16 %v724
      %v772 = vunpack.c.l.b16 %v725
      %v773 = vunpack.c.l.b16 %v726
      %v774 = vunpack.c.l.b16 %v727
      %v775 = vunpack.c.l.b16 %v728
      %v776 = vunpack.c.l.b16 %v729
      %v777 = vunpack.c.l.b16 %v730
      %v778 = vunpack.c.l.b16 %v731
      %v779 = vpack.c.b16 %v764, %v763
      %v780 = vpack.c.b16 %v766, %v765
      %v781 = vpack.c.b16 %v768, %v767
      %v782 = vpack.c.b16 %v770, %v769
      %v783 = vpack.c.b16 %v772, %v771
      %v784 = vpack.c.b16 %v774, %v773
      %v785 = vpack.c.b16 %v776, %v775
      %v786 = vpack.c.b16 %v778, %v777
      %795 = vmatprep.subr.bf16.mxu0 0
      %796 = vmatpush1.bf16.msra.mxu0 %v732
      %797 = vmatprep.subr.bf16.mxu0 0
      %798 = vmatpush1.bf16.msra.mxu0 %v733
      %799 = vmatprep.subr.bf16.mxu0 0
      %800 = vmatpush1.bf16.msra.mxu0 %v734
      %801 = vmatprep.subr.bf16.mxu0 0
      %802 = vmatpush1.bf16.msra.mxu0 %v735
      %803 = vmatprep.subr.bf16.mxu0 0
      %804 = vmatpush1.bf16.msra.mxu0 %v736
      %805 = vmatprep.subr.bf16.mxu0 0
      %806 = vmatpush1.bf16.msra.mxu0 %v737
      %807 = vmatprep.subr.bf16.mxu0 0
      %808 = vmatpush1.bf16.msra.mxu0 %v738
      %809 = vmatprep.subr.bf16.mxu0 0
      %810 = vmatpush1.bf16.msra.mxu0 %v739
      %811 = vmatprep.subr.bf16.mxu0 0
      %812 = vmatpush1.bf16.msra.mxu0 0
      %813 = vmatprep.subr.bf16.mxu0 0
      %814 = vmatpush1.bf16.msra.mxu0 0
      %815 = vmatprep.subr.bf16.mxu0 0
      %816 = vmatpush1.bf16.msra.mxu0 0
      %817 = vmatprep.subr.bf16.mxu0 0
      %818 = vmatpush1.bf16.msra.mxu0 0
      %819 = vmatprep.subr.bf16.mxu0 0
      %820 = vmatpush1.bf16.msra.mxu0 0
      %821 = vmatprep.subr.bf16.mxu0 0
      %822 = vmatpush1.bf16.msra.mxu0 0
      %823 = vmatprep.subr.bf16.mxu0 0
      %824 = vmatpush1.bf16.msra.mxu0 0
      %825 = vmatprep.subr.bf16.mxu0 0
      %826 = vmatpush1.bf16.msra.mxu0 0
      %827 = vmatprep.mubr.bf16.mxu0 0
      %828 = vmatmul.mubr.bf16.gmra.mrb[0].mxu0 %v779
      %v829 = vpop.f32.mrb[0].mxu0
      %v830 = vadd.f32 %v745, %v829
      %v831 = vpop.f32.mrb[0].mxu0
      %v832 = vpop.f32.mrb[0].mxu0
      %v833 = vadd.f32 %v745, %v832
      %v834 = vpop.f32.mrb[0].mxu0
      %835 = vmatprep.mubr.bf16.mxu0 0
      %836 = vmatmul.mubr.bf16.gmra.mrb[0].mxu0 %v780
      %v837 = vpop.f32.mrb[0].mxu0
      %v838 = vadd.f32 %v745, %v837
      %v839 = vpop.f32.mrb[0].mxu0
      %v840 = vpop.f32.mrb[0].mxu0
      %v841 = vadd.f32 %v745, %v840
      %v842 = vpop.f32.mrb[0].mxu0
      %843 = vmatprep.mubr.bf16.mxu0 0
      %844 = vmatmul.mubr.bf16.gmra.mrb[0].mxu0 %v781
      %v845 = vpop.f32.mrb[0].mxu0
      %v846 = vadd.f32 %v745, %v845
      %v847 = vpop.f32.mrb[0].mxu0
      %v848 = vpop.f32.mrb[0].mxu0
      %v849 = vadd.f32 %v745, %v848
      %v850 = vpop.f32.mrb[0].mxu0
      %851 = vmatprep.mubr.bf16.mxu0 0
      %852 = vmatmul.mubr.bf16.gmra.mrb[0].mxu0 %v782
      %v853 = vpop.f32.mrb[0].mxu0
      %v854 = vadd.f32 %v745, %v853
      %v855 = vpop.f32.mrb[0].mxu0
      %v856 = vpop.f32.mrb[0].mxu0
      %v857 = vadd.f32 %v745, %v856
      %v858 = vpop.f32.mrb[0].mxu0
      %859 = vmatprep.mubr.bf16.mxu0 0
      %860 = vmatmul.mubr.bf16.gmra.mrb[0].mxu0 %v783
      %v861 = vpop.f32.mrb[0].mxu0
      %v862 = vadd.f32 %v745, %v861
      %v863 = vpop.f32.mrb[0].mxu0
      %v864 = vpop.f32.mrb[0].mxu0
      %v865 = vadd.f32 %v745, %v864
      %v866 = vpop.f32.mrb[0].mxu0
      %867 = vmatprep.mubr.bf16.mxu0 0
      %868 = vmatmul.mubr.bf16.gmra.mrb[0].mxu0 %v784
      %v869 = vpop.f32.mrb[0].mxu0
      %v870 = vadd.f32 %v745, %v869
      %v871 = vpop.f32.mrb[0].mxu0
      %v872 = vpop.f32.mrb[0].mxu0
      %v873 = vadd.f32 %v745, %v872
      %v874 = vpop.f32.mrb[0].mxu0
      %875 = vmatprep.mubr.bf16.mxu0 0
      %876 = vmatmul.mubr.bf16.gmra.mrb[0].mxu0 %v785
      %v877 = vpop.f32.mrb[0].mxu0
      %v878 = vadd.f32 %v745, %v877
      %v879 = vpop.f32.mrb[0].mxu0
      %v880 = vpop.f32.mrb[0].mxu0
      %v881 = vadd.f32 %v745, %v880
      %v882 = vpop.f32.mrb[0].mxu0
      %883 = vmatprep.mubr.bf16.mxu0 0
      %884 = vmatmul.mubr.bf16.gmra.mrb[0].mxu0 %v786
      %v885 = vpop.f32.mrb[0].mxu0
      %v886 = vadd.f32 %v745, %v885
      %v887 = vpop.f32.mrb[0].mxu0
      %v888 = vpop.f32.mrb[0].mxu0
      %v889 = vadd.f32 %v745, %v888
      %v890 = vpop.f32.mrb[0].mxu0
      %891 = vdwg.mxu0
      %p892 = scmp.lt.s32.totalorder %s20, 2
      // Predicated region
      $region49: #{mpnn_forward.1} parent=39 // pred_check
        %p893 = pneg %p892
      $region50: #{mpnn_forward.1} parent=39 // pred_check_branch
        %895 = sbr.rel (%p893) target = $region52
      $region51: #{mpnn_forward.1} parent=39 // pred_region
        %v896 = vmax.f32 %v830, 0.0
        %v897 = vmax.f32 %v833, 0.0
        %v898 = vmax.f32 %v838, 0.0
        %v899 = vmax.f32 %v841, 0.0
        %v900 = vmax.f32 %v846, 0.0
        %v901 = vmax.f32 %v849, 0.0
        %v902 = vmax.f32 %v854, 0.0
        %v903 = vmax.f32 %v857, 0.0
        %v904 = vmax.f32 %v862, 0.0
        %v905 = vmax.f32 %v865, 0.0
        %v906 = vmax.f32 %v870, 0.0
        %v907 = vmax.f32 %v873, 0.0
        %v908 = vmax.f32 %v878, 0.0
        %v909 = vmax.f32 %v881, 0.0
        %v910 = vmax.f32 %v886, 0.0
        %v911 = vmax.f32 %v889, 0.0
        %v912 = vpack.c.bf16 %v897, %v896
        %v913 = vpack.c.bf16 %v899, %v898
        %v914 = vpack.c.bf16 %v901, %v900
        %v915 = vpack.c.bf16 %v903, %v902
        %v916 = vpack.c.bf16 %v905, %v904
        %v917 = vpack.c.bf16 %v907, %v906
        %v918 = vpack.c.bf16 %v909, %v908
        %v919 = vpack.c.bf16 %v911, %v910
        %p920 = scmp.lt.s32.totalorder %s20, 0
        %s921 = ssub.s32 0, %s20
        %s922 = scalar_select %p920, %s921, %s20
        %s923 = sand.u32 %s922, 1
        %s924 = ssub.s32 0, %s923
        %s925 = scalar_select %p920, %s924, %s923
        %p926 = scmp.ne.s32.totalorder %s925, 0
        %p927 = scmp.lt.s32.totalorder %s925, 0
        %p928 = pnand %p927, %p926
        %p929 = pneg %p928
        %s930 = sadd.s32 %s925, 2
        %s931 = scalar_select %p929, %s930, %s925
        %s932 = sshra.s32 %s258, 4
        %s933 = sand.u32 %s258, 15
        %s934 = smul.u32 %s931, 8
        %s935 = sadd.s32 %s932, %s934
        %s936 = smul.addr %s935, 8
        %s937 = scalar_lea.vmem [#allocation2], %s936
        %938 = vst [vmem:[%s937] sm:$0xff] %v912
        %939 = vst [vmem:[%s937 + $0x8] sm:$0xff] %v913
        %940 = vst [vmem:[%s937 + $0x10] sm:$0xff] %v914
        %941 = vst [vmem:[%s937 + $0x18] sm:$0xff] %v915
        %942 = vst [vmem:[%s937 + $0x20] sm:$0xff] %v916
        %943 = vst [vmem:[%s937 + $0x28] sm:$0xff] %v917
        %944 = vst [vmem:[%s937 + $0x30] sm:$0xff] %v918
        %945 = vst [vmem:[%s937 + $0x38] sm:$0xff] %v919
      $region52: #{mpnn_forward.1} parent=39 // pred_fallthru
        _
      %p946 = scmp.eq.s32.totalorder %s20, 2
      // Predicated region
      $region53: #{mpnn_forward.1} parent=39 // pred_check
        %p947 = pneg %p946
      $region54: #{mpnn_forward.1} parent=39 // pred_check_branch
        %949 = sbr.rel (%p947) target = $region56
      $region55: #{mpnn_forward.1} parent=39 // pred_region
        %v950 = vlaneseq
        %v951 = vand.u32 %v950, 127
        %vm952 = vcmp.lt.s32.totalorder %v951, 4
        %v953 = vsel %vm952, %v830, -inf
        %v954 = vsel %vm952, %v833, -inf
        %v955 = vsel %vm952, %v838, -inf
        %v956 = vsel %vm952, %v841, -inf
        %v957 = vsel %vm952, %v846, -inf
        %v958 = vsel %vm952, %v849, -inf
        %v959 = vsel %vm952, %v854, -inf
        %v960 = vsel %vm952, %v857, -inf
        %v961 = vsel %vm952, %v862, -inf
        %v962 = vsel %vm952, %v865, -inf
        %v963 = vsel %vm952, %v870, -inf
        %v964 = vsel %vm952, %v873, -inf
        %v965 = vsel %vm952, %v878, -inf
        %v966 = vsel %vm952, %v881, -inf
        %v967 = vsel %vm952, %v886, -inf
        %v968 = vsel %vm952, %v889, -inf
        %969 = vmax.xlane.f32.xlu0 %v953
        %v970 = vpop.xlane.xlu0 %969
        %971 = vmax.xlane.f32.xlu0 %v954
        %v972 = vpop.xlane.xlu0 %971
        %973 = vmax.xlane.f32.xlu0 %v955
        %v974 = vpop.xlane.xlu0 %973
        %975 = vmax.xlane.f32.xlu0 %v956
        %v976 = vpop.xlane.xlu0 %975
        %977 = vmax.xlane.f32.xlu0 %v957
        %v978 = vpop.xlane.xlu0 %977
        %979 = vmax.xlane.f32.xlu0 %v958
        %v980 = vpop.xlane.xlu0 %979
        %981 = vmax.xlane.f32.xlu0 %v959
        %v982 = vpop.xlane.xlu0 %981
        %983 = vmax.xlane.f32.xlu0 %v960
        %v984 = vpop.xlane.xlu0 %983
        %985 = vmax.xlane.f32.xlu0 %v961
        %v986 = vpop.xlane.xlu0 %985
        %987 = vmax.xlane.f32.xlu0 %v962
        %v988 = vpop.xlane.xlu0 %987
        %989 = vmax.xlane.f32.xlu0 %v963
        %v990 = vpop.xlane.xlu0 %989
        %991 = vmax.xlane.f32.xlu0 %v964
        %v992 = vpop.xlane.xlu0 %991
        %993 = vmax.xlane.f32.xlu0 %v965
        %v994 = vpop.xlane.xlu0 %993
        %995 = vmax.xlane.f32.xlu0 %v966
        %v996 = vpop.xlane.xlu0 %995
        %997 = vmax.xlane.f32.xlu0 %v967
        %v998 = vpop.xlane.xlu0 %997
        %999 = vmax.xlane.f32.xlu0 %v968
        %v1000 = vpop.xlane.xlu0 %999
        %v1001 = vsub.f32 %v953, %v970
        %v1002 = vsub.f32 %v954, %v972
        %v1003 = vsub.f32 %v955, %v974
        %v1004 = vsub.f32 %v956, %v976
        %v1005 = vsub.f32 %v957, %v978
        %v1006 = vsub.f32 %v958, %v980
        %v1007 = vsub.f32 %v959, %v982
        %v1008 = vsub.f32 %v960, %v984
        %v1009 = vsub.f32 %v961, %v986
        %v1010 = vsub.f32 %v962, %v988
        %v1011 = vsub.f32 %v963, %v990
        %v1012 = vsub.f32 %v964, %v992
        %v1013 = vsub.f32 %v965, %v994
        %v1014 = vsub.f32 %v966, %v996
        %v1015 = vsub.f32 %v967, %v998
        %v1016 = vsub.f32 %v968, %v1000
        %v1017 = vmul.f32 %v1001, 1.442695
        %v1018 = vpow.pop %v1017
        %v1019 = vmul.f32 %v1002, 1.442695
        %v1020 = vpow.pop %v1019
        %v1021 = vmul.f32 %v1003, 1.442695
        %v1022 = vpow.pop %v1021
        %v1023 = vmul.f32 %v1004, 1.442695
        %v1024 = vpow.pop %v1023
        %v1025 = vmul.f32 %v1005, 1.442695
        %v1026 = vpow.pop %v1025
        %v1027 = vmul.f32 %v1006, 1.442695
        %v1028 = vpow.pop %v1027
        %v1029 = vmul.f32 %v1007, 1.442695
        %v1030 = vpow.pop %v1029
        %v1031 = vmul.f32 %v1008, 1.442695
        %v1032 = vpow.pop %v1031
        %v1033 = vmul.f32 %v1009, 1.442695
        %v1034 = vpow.pop %v1033
        %v1035 = vmul.f32 %v1010, 1.442695
        %v1036 = vpow.pop %v1035
        %v1037 = vmul.f32 %v1011, 1.442695
        %v1038 = vpow.pop %v1037
        %v1039 = vmul.f32 %v1012, 1.442695
        %v1040 = vpow.pop %v1039
        %v1041 = vmul.f32 %v1013, 1.442695
        %v1042 = vpow.pop %v1041
        %v1043 = vmul.f32 %v1014, 1.442695
        %v1044 = vpow.pop %v1043
        %v1045 = vmul.f32 %v1015, 1.442695
        %v1046 = vpow.pop %v1045
        %v1047 = vmul.f32 %v1016, 1.442695
        %v1048 = vpow.pop %v1047
        %1049 = vadd.xlane.f32.xlu0 %v1018
        %v1050 = vpop.xlane.xlu0 %1049
        %1051 = vadd.xlane.f32.xlu0 %v1020
        %v1052 = vpop.xlane.xlu0 %1051
        %1053 = vadd.xlane.f32.xlu0 %v1022
        %v1054 = vpop.xlane.xlu0 %1053
        %1055 = vadd.xlane.f32.xlu0 %v1024
        %v1056 = vpop.xlane.xlu0 %1055
        %1057 = vadd.xlane.f32.xlu0 %v1026
        %v1058 = vpop.xlane.xlu0 %1057
        %1059 = vadd.xlane.f32.xlu0 %v1028
        %v1060 = vpop.xlane.xlu0 %1059
        %1061 = vadd.xlane.f32.xlu0 %v1030
        %v1062 = vpop.xlane.xlu0 %1061
        %1063 = vadd.xlane.f32.xlu0 %v1032
        %v1064 = vpop.xlane.xlu0 %1063
        %1065 = vadd.xlane.f32.xlu0 %v1034
        %v1066 = vpop.xlane.xlu0 %1065
        %1067 = vadd.xlane.f32.xlu0 %v1036
        %v1068 = vpop.xlane.xlu0 %1067
        %1069 = vadd.xlane.f32.xlu0 %v1038
        %v1070 = vpop.xlane.xlu0 %1069
        %1071 = vadd.xlane.f32.xlu0 %v1040
        %v1072 = vpop.xlane.xlu0 %1071
        %1073 = vadd.xlane.f32.xlu0 %v1042
        %v1074 = vpop.xlane.xlu0 %1073
        %1075 = vadd.xlane.f32.xlu0 %v1044
        %v1076 = vpop.xlane.xlu0 %1075
        %1077 = vadd.xlane.f32.xlu0 %v1046
        %v1078 = vpop.xlane.xlu0 %1077
        %1079 = vadd.xlane.f32.xlu0 %v1048
        %v1080 = vpop.xlane.xlu0 %1079
        %v1081 = vlog2.pop %v1050
        %v1082 = vmul.f32 %v1081, 0.6931472
        %v1083 = vlog2.pop %v1052
        %v1084 = vmul.f32 %v1083, 0.6931472
        %v1085 = vlog2.pop %v1054
        %v1086 = vmul.f32 %v1085, 0.6931472
        %v1087 = vlog2.pop %v1056
        %v1088 = vmul.f32 %v1087, 0.6931472
        %v1089 = vlog2.pop %v1058
        %v1090 = vmul.f32 %v1089, 0.6931472
        %v1091 = vlog2.pop %v1060
        %v1092 = vmul.f32 %v1091, 0.6931472
        %v1093 = vlog2.pop %v1062
        %v1094 = vmul.f32 %v1093, 0.6931472
        %v1095 = vlog2.pop %v1064
        %v1096 = vmul.f32 %v1095, 0.6931472
        %v1097 = vlog2.pop %v1066
        %v1098 = vmul.f32 %v1097, 0.6931472
        %v1099 = vlog2.pop %v1068
        %v1100 = vmul.f32 %v1099, 0.6931472
        %v1101 = vlog2.pop %v1070
        %v1102 = vmul.f32 %v1101, 0.6931472
        %v1103 = vlog2.pop %v1072
        %v1104 = vmul.f32 %v1103, 0.6931472
        %v1105 = vlog2.pop %v1074
        %v1106 = vmul.f32 %v1105, 0.6931472
        %v1107 = vlog2.pop %v1076
        %v1108 = vmul.f32 %v1107, 0.6931472
        %v1109 = vlog2.pop %v1078
        %v1110 = vmul.f32 %v1109, 0.6931472
        %v1111 = vlog2.pop %v1080
        %v1112 = vmul.f32 %v1111, 0.6931472
        %v1113 = vsub.f32 %v830, %v970
        %v1114 = vsub.f32 %v833, %v972
        %v1115 = vsub.f32 %v838, %v974
        %v1116 = vsub.f32 %v841, %v976
        %v1117 = vsub.f32 %v846, %v978
        %v1118 = vsub.f32 %v849, %v980
        %v1119 = vsub.f32 %v854, %v982
        %v1120 = vsub.f32 %v857, %v984
        %v1121 = vsub.f32 %v862, %v986
        %v1122 = vsub.f32 %v865, %v988
        %v1123 = vsub.f32 %v870, %v990
        %v1124 = vsub.f32 %v873, %v992
        %v1125 = vsub.f32 %v878, %v994
        %v1126 = vsub.f32 %v881, %v996
        %v1127 = vsub.f32 %v886, %v998
        %v1128 = vsub.f32 %v889, %v1000
        %v1129 = vsub.f32 %v1113, %v1082
        %v1130 = vsub.f32 %v1114, %v1084
        %v1131 = vsub.f32 %v1115, %v1086
        %v1132 = vsub.f32 %v1116, %v1088
        %v1133 = vsub.f32 %v1117, %v1090
        %v1134 = vsub.f32 %v1118, %v1092
        %v1135 = vsub.f32 %v1119, %v1094
        %v1136 = vsub.f32 %v1120, %v1096
        %v1137 = vsub.f32 %v1121, %v1098
        %v1138 = vsub.f32 %v1122, %v1100
        %v1139 = vsub.f32 %v1123, %v1102
        %v1140 = vsub.f32 %v1124, %v1104
        %v1141 = vsub.f32 %v1125, %v1106
        %v1142 = vsub.f32 %v1126, %v1108
        %v1143 = vsub.f32 %v1127, %v1110
        %v1144 = vsub.f32 %v1128, %v1112
        %v1145 = vsel %vm952, %v1129, 0.0
        %v1146 = vsel %vm952, %v1130, 0.0
        %v1147 = vsel %vm952, %v1131, 0.0
        %v1148 = vsel %vm952, %v1132, 0.0
        %v1149 = vsel %vm952, %v1133, 0.0
        %v1150 = vsel %vm952, %v1134, 0.0
        %v1151 = vsel %vm952, %v1135, 0.0
        %v1152 = vsel %vm952, %v1136, 0.0
        %v1153 = vsel %vm952, %v1137, 0.0
        %v1154 = vsel %vm952, %v1138, 0.0
        %v1155 = vsel %vm952, %v1139, 0.0
        %v1156 = vsel %vm952, %v1140, 0.0
        %v1157 = vsel %vm952, %v1141, 0.0
        %v1158 = vsel %vm952, %v1142, 0.0
        %v1159 = vsel %vm952, %v1143, 0.0
        %v1160 = vsel %vm952, %v1144, 0.0
        %s1161 = scalar_lea.vmem %s5, %s258
        %1162 = vst [vmem:[%s1161] sm:$0xff] %v1145
        %1163 = vst [vmem:[%s1161 + $0x8] sm:$0xff] %v1146
        %1164 = vst [vmem:[%s1161 + $0x10] sm:$0xff] %v1147
        %1165 = vst [vmem:[%s1161 + $0x18] sm:$0xff] %v1148
        %1166 = vst [vmem:[%s1161 + $0x20] sm:$0xff] %v1149
        %1167 = vst [vmem:[%s1161 + $0x28] sm:$0xff] %v1150
        %1168 = vst [vmem:[%s1161 + $0x30] sm:$0xff] %v1151
        %1169 = vst [vmem:[%s1161 + $0x38] sm:$0xff] %v1152
        %1170 = vst [vmem:[%s1161 + $0x40] sm:$0xff] %v1153
        %1171 = vst [vmem:[%s1161 + $0x48] sm:$0xff] %v1154
        %1172 = vst [vmem:[%s1161 + $0x50] sm:$0xff] %v1155
        %1173 = vst [vmem:[%s1161 + $0x58] sm:$0xff] %v1156
        %1174 = vst [vmem:[%s1161 + $0x60] sm:$0xff] %v1157
        %1175 = vst [vmem:[%s1161 + $0x68] sm:$0xff] %v1158
        %1176 = vst [vmem:[%s1161 + $0x70] sm:$0xff] %v1159
        %1177 = vst [vmem:[%s1161 + $0x78] sm:$0xff] %v1160
      $region56: #{mpnn_forward.1} parent=39 // pred_fallthru
        _
      // Predicated region
      $region57: #{mpnn_forward.1} parent=39 // pred_check
        %p1178 = pneg %p162
      $region58: #{mpnn_forward.1} parent=39 // pred_check_branch
        %1180 = sbr.rel (%p1178) target = $region60
      $region59: #{mpnn_forward.1} parent=39 // pred_region
        _
      $region60: #{mpnn_forward.1} parent=39 // pred_fallthru
        _
      // Predicated region
      $region61: #{mpnn_forward.1} parent=39 // pred_check
        %p1181 = pneg %p162
      $region62: #{mpnn_forward.1} parent=39 // pred_check_branch
        %1183 = sbr.rel (%p1181) target = $region64
      $region63: #{mpnn_forward.1} parent=39 // pred_region
        _
      $region64: #{mpnn_forward.1} parent=39 // pred_fallthru
        _
    $region40: #{mpnn_forward.1} parent=5 // pred_fallthru
      _
    %p1184 = scmp.le.s32.totalorder 2, %s11
    // Predicated region
    $region65: #{mpnn_forward.1} parent=5 // pred_check
      %p1185 = pneg %p1184
    $region66: #{mpnn_forward.1} parent=5 // pred_check_branch
      %1187 = sbr.rel (%p1185) target = $region68
    $region67: #{mpnn_forward.1} parent=5 // pred_region
      %s1188 = ssub.s32 %s11, 2
    $region68: #{mpnn_forward.1} parent=5 // pred_fallthru
      _
  $region6: #{mpnn_forward.1} parent=0 // loop_footer
    %s15 = sadd.s32 1, %s11
  $region7: #{mpnn_forward.1} parent=0 // loop_footer_branch
    %10 = sbr.rel target = $region3
  $region8: #{mpnn_forward.1} parent=0 // loop_exit
    _

</llo_original>
